<compile_context>
chip_gen: v5e
topology: v5e:2x2
jax: 0.10.0
libtpu: 0.0.40
codegen_flags: <defaults>
</compile_context>

<pallas_src>
import jax
import jax.numpy as jnp
from jax.experimental import pallas as pl
from jax.experimental.pallas import tpu as pltpu

LANE = 128      # TPU lane width.
SUBLANE = 8     # TPU sublane width (batch tiles kept a multiple of this).
_HIGHEST = jax.lax.Precision.HIGHEST


def _leaky_relu(x, slope=0.2):
    return jnp.where(x > 0, x, slope * x)


def _round_up(n, m):
    return ((n + m - 1) // m) * m


def tcl_mlp_kernel(x_ref,
                   w1_ref, b1_ref,
                   w2_ref, b2_ref,
                   w3_ref, b3_ref,
                   w4p_ref, b4p_ref,
                   out_ref):
    """One batch tile of the fused TCLMLP forward.

    out_ref receives the packed slab [logits | feats | zero-pad]; the last
    matmul produces it directly because w4p carries an appended identity block
    (see prepare_padded_params), so a single lane-dense store hits HBM.
    """
    wdt = w1_ref.dtype                       # f32, or bf16 on the fast path
    x = x_ref[...].astype(wdt)               # (tb, input_dim), K kept small

    h = jnp.dot(x, w1_ref[...],
                preferred_element_type=jnp.float32, precision=_HIGHEST)
    h = _leaky_relu(h + b1_ref[...])

    h = jnp.dot(h.astype(wdt), w2_ref[...],
                preferred_element_type=jnp.float32, precision=_HIGHEST)
    h = _leaky_relu(h + b2_ref[...])

    z = jnp.dot(h.astype(wdt), w3_ref[...],
                preferred_element_type=jnp.float32, precision=_HIGHEST)
    z = _leaky_relu(z + b3_ref[...])

    feats = jnp.abs(z)

    # Packed 4th layer: columns [0:nclass]=W4, [nclass:nclass+z_dim]=I, rest 0.
    out = jnp.dot(feats.astype(wdt), w4p_ref[...],
                  preferred_element_type=jnp.float32, precision=_HIGHEST)
    out = out + b4p_ref[...]

    out_ref[...] = out.astype(out_ref.dtype)  # one unmasked full-lane store


def prepare_padded_params(params, *, use_bf16=False):
    """Pad / pack the weights ONCE (hoisted out of the per-call path).

    Weights are stored [in, out].  w4 is packed with an identity block so the
    final matmul emits [logits | feats] in a single lane-dense slab.
    """
    f32 = jnp.float32
    wdt = jnp.bfloat16 if use_bf16 else f32   # bf16 fast path for v6e/v7x MXU

    input_dim, hidden_dim = params["w1"].shape
    z_dim = params["w3"].shape[1]
    nclass = params["w4"].shape[1]

    hid_p = _round_up(hidden_dim, LANE)
    z_p = _round_up(z_dim, LANE)
    out_p = _round_up(nclass + z_dim, LANE)

    w1 = jnp.pad(params["w1"], ((0, 0), (0, hid_p - hidden_dim)))  # K unpadded
    b1 = jnp.pad(params["b1"], ((0, 0), (0, hid_p - hidden_dim)))
    w2 = jnp.pad(params["w2"], ((0, hid_p - hidden_dim), (0, hid_p - hidden_dim)))
    b2 = jnp.pad(params["b2"], ((0, 0), (0, hid_p - hidden_dim)))
    w3 = jnp.pad(params["w3"], ((0, hid_p - hidden_dim), (0, z_p - z_dim)))
    b3 = jnp.pad(params["b3"], ((0, 0), (0, z_p - z_dim)))

    w4p = jnp.zeros((z_p, out_p), f32)
    w4p = w4p.at[:z_dim, :nclass].set(params["w4"].astype(f32))
    w4p = w4p.at[:z_dim, nclass:nclass + z_dim].set(jnp.eye(z_dim, dtype=f32))
    b4p = jnp.zeros((1, out_p), f32)
    b4p = b4p.at[:, :nclass].set(params["b4"].astype(f32))

    return {
        "w1": w1.astype(wdt), "b1": b1.astype(f32),
        "w2": w2.astype(wdt), "b2": b2.astype(f32),
        "w3": w3.astype(wdt), "b3": b3.astype(f32),
        "w4p": w4p.astype(wdt), "b4p": b4p.astype(f32),
        "dims": dict(input_dim=input_dim, hidden_dim=hidden_dim, z_dim=z_dim,
                     nclass=nclass, hid_p=hid_p, z_p=z_p, out_p=out_p),
    }


def tcl_mlp_forward(x, padded, *, block_b=1024):
    """x: [B, input_dim].  padded: output of prepare_padded_params."""
    dims = padded["dims"]
    B, input_dim = x.shape
    assert input_dim == dims["input_dim"]
    hid_p, z_p, out_p = dims["hid_p"], dims["z_p"], dims["out_p"]
    nclass, z_dim = dims["nclass"], dims["z_dim"]
    wdt = padded["w1"].dtype
    f32 = jnp.float32

    # Batch tile: >= 2 grid steps whenever B > 8 so the "parallel" batch axis
    # actually feeds both v7x TensorCores; large tiles for large batches.
    if B <= SUBLANE:
        tb = SUBLANE
    else:
        tb = min(block_b, _round_up(pl.cdiv(B, 2), SUBLANE))
    b_pad = _round_up(B, tb)
    grid = (b_pad // tb,)

    xp = x.astype(wdt)
    if b_pad != B:
        xp = jnp.pad(xp, ((0, b_pad - B), (0, 0)))  # batch pad only; no lane pad

    # x / output walk the batch grid; weights & biases use a constant
    # index_map => VMEM-resident across the whole grid (fetched once).
    resident = lambda shape: pl.BlockSpec(shape, lambda i: (0, 0))
    in_specs = [
        pl.BlockSpec((tb, input_dim), lambda i: (i, 0)),   # x (unpadded K)
        resident((input_dim, hid_p)), resident((1, hid_p)),
        resident((hid_p, hid_p)), resident((1, hid_p)),
        resident((hid_p, z_p)), resident((1, z_p)),
        resident((z_p, out_p)), resident((1, out_p)),
    ]
    out_specs = pl.BlockSpec((tb, out_p), lambda i: (i, 0))   # packed slab
    out_shape = jax.ShapeDtypeStruct((b_pad, out_p), f32)

    out = pl.pallas_call(
        tcl_mlp_kernel,
        out_shape=out_shape,
        grid_spec=pltpu.PrefetchScalarGridSpec(
            num_scalar_prefetch=0,
            grid=grid,
            in_specs=in_specs,
            out_specs=out_specs,
        ),
        compiler_params=pltpu.CompilerParams(
            dimension_semantics=("parallel",),   # batch across TCs on v7x
            vmem_limit_bytes=32 * 1024 * 1024,   # explicit; safe on v7x 64 MiB
        ),
    )(xp, padded["w1"], padded["b1"], padded["w2"], padded["b2"],
      padded["w3"], padded["b3"], padded["w4p"], padded["b4p"])

    # Split the packed slab and strip batch padding.
    logits = out[:B, :nclass]
    feats = out[:B, nclass:nclass + z_dim]
    return logits, feats


def init_params(key, input_dim=8, z_dim=8, hidden_dim=128, nclass=20):
    """normal_init: weights ~ N(0, 0.02), biases = 0 (deterministic via PRNGKey)."""
    k1, k2, k3, k4 = jax.random.split(key, 4)
    std = 0.02
    # Weights stored [in, out] (pre-transposed vs. PyTorch's [out, in]).
    return {
        "w1": std * jax.random.normal(k1, (input_dim, hidden_dim), jnp.float32),
        "b1": jnp.zeros((1, hidden_dim), jnp.float32),
        "w2": std * jax.random.normal(k2, (hidden_dim, hidden_dim), jnp.float32),
        "b2": jnp.zeros((1, hidden_dim), jnp.float32),
        "w3": std * jax.random.normal(k3, (hidden_dim, z_dim), jnp.float32),
        "b3": jnp.zeros((1, z_dim), jnp.float32),
        "w4": std * jax.random.normal(k4, (z_dim, nclass), jnp.float32),
        "b4": jnp.zeros((1, nclass), jnp.float32),
    }


def reference_forward(x, params):
    """Pure-JAX reference for correctness checking (precision pinned)."""
    dot = lambda a, b: jnp.dot(a, b, precision=_HIGHEST)
    h = _leaky_relu(dot(x, params["w1"]) + params["b1"])
    h = _leaky_relu(dot(h, params["w2"]) + params["b2"])
    z = _leaky_relu(dot(h, params["w3"]) + params["b3"])
    feats = jnp.abs(z)
    logits = dot(feats, params["w4"]) + params["b4"]
    return logits, feats


def _check(B, input_dim, z_dim, hidden_dim, nclass, key):
    kx, kp = jax.random.split(key)
    x = jax.random.normal(kx, (B, input_dim), jnp.float32)
    params = init_params(kp, input_dim, z_dim, hidden_dim, nclass)
    padded = prepare_padded_params(params)       # once; hoisted out of call path

    logits, feats = tcl_mlp_forward(x, padded)
    jax.block_until_ready((logits, feats))

    ref_logits, ref_feats = reference_forward(x, params)
    assert logits.shape == (B, nclass) and feats.shape == (B, z_dim)
    assert jnp.allclose(logits, ref_logits, atol=1e-5, rtol=1e-5)
    assert jnp.allclose(feats, ref_feats, atol=1e-5, rtol=1e-5)


if __name__ == "__main__":
    key = jax.random.PRNGKey(0)
    k0, k1 = jax.random.split(key)

    # Module-default dims, small batch (single grid step).
    _check(B=8, input_dim=8, z_dim=8, hidden_dim=128, nclass=20, key=k0)
    # Non-multiple batch: exercises multi-step grid + batch padding path.
    _check(B=37, input_dim=8, z_dim=8, hidden_dim=128, nclass=20, key=k1)

    print("KERNEL_OK")
</pallas_src>

<mosaic_0001>
module attributes {stable_mosaic.version = 11 : i64} {
  func.func @tcl_mlp_kernel(%arg0: i32, %arg1: memref<8x8xf32, #tpu.memory_space<vmem>>, %arg2: memref<8x128xf32, #tpu.memory_space<vmem>>, %arg3: memref<1x128xf32, #tpu.memory_space<vmem>>, %arg4: memref<128x128xf32, #tpu.memory_space<vmem>>, %arg5: memref<1x128xf32, #tpu.memory_space<vmem>>, %arg6: memref<128x128xf32, #tpu.memory_space<vmem>>, %arg7: memref<1x128xf32, #tpu.memory_space<vmem>>, %arg8: memref<128x128xf32, #tpu.memory_space<vmem>>, %arg9: memref<1x128xf32, #tpu.memory_space<vmem>>, %arg10: memref<8x128xf32, #tpu.memory_space<vmem>>) attributes {dimension_semantics = [#tpu.dimension_semantics<parallel>], iteration_bounds = array<i64: 1>, scalar_prefetch = 0 : i64, scratch_operands = 0 : i64, tpu.core_type = #tpu.core_type<tc>, window_params = [{transform_indices = @transform_0, window_bounds = array<i64: 8, 8>}, {pipeline_mode = #tpu.pipeline_mode<synchronous>, transform_indices = @transform_1, window_bounds = array<i64: 8, 128>}, {pipeline_mode = #tpu.pipeline_mode<synchronous>, transform_indices = @transform_2, window_bounds = array<i64: 1, 128>}, {pipeline_mode = #tpu.pipeline_mode<synchronous>, transform_indices = @transform_3, window_bounds = array<i64: 128, 128>}, {pipeline_mode = #tpu.pipeline_mode<synchronous>, transform_indices = @transform_4, window_bounds = array<i64: 1, 128>}, {pipeline_mode = #tpu.pipeline_mode<synchronous>, transform_indices = @transform_5, window_bounds = array<i64: 128, 128>}, {pipeline_mode = #tpu.pipeline_mode<synchronous>, transform_indices = @transform_6, window_bounds = array<i64: 1, 128>}, {pipeline_mode = #tpu.pipeline_mode<synchronous>, transform_indices = @transform_7, window_bounds = array<i64: 128, 128>}, {pipeline_mode = #tpu.pipeline_mode<synchronous>, transform_indices = @transform_8, window_bounds = array<i64: 1, 128>}, {transform_indices = @transform_9, window_bounds = array<i64: 8, 128>}]} {
    %c0 = arith.constant 0 : index
    %c0_0 = arith.constant 0 : index
    %0 = vector.load %arg1[%c0, %c0_0] : memref<8x8xf32, #tpu.memory_space<vmem>>, vector<8x8xf32>
    %c0_1 = arith.constant 0 : index
    %c0_2 = arith.constant 0 : index
    %1 = vector.load %arg2[%c0_1, %c0_2] : memref<8x128xf32, #tpu.memory_space<vmem>>, vector<8x128xf32>
    %cst = arith.constant dense<0.000000e+00> : vector<8x128xf32>
    %2 = tpu.matmul %0, %1, %cst {dimension_numbers = #tpu.dot_dimension_numbers<[1], [0], [0], [1], [0, 0, 1, 1], [], []>, precision = #tpu.contract_precision<fp32>} : vector<8x8xf32>, vector<8x128xf32>, vector<8x128xf32> -> vector<8x128xf32>
    %c0_3 = arith.constant 0 : index
    %c0_4 = arith.constant 0 : index
    %3 = vector.load %arg3[%c0_3, %c0_4] : memref<1x128xf32, #tpu.memory_space<vmem>>, vector<1x128xf32>
    %4 = vector.broadcast %3 : vector<1x128xf32> to vector<8x128xf32>
    %5 = arith.addf %2, %4 : vector<8x128xf32>
    %cst_5 = arith.constant 0.000000e+00 : f32
    %6 = vector.broadcast %cst_5 : f32 to vector<8x128xf32>
    %7 = arith.cmpf ogt, %5, %6 : vector<8x128xf32>
    %cst_6 = arith.constant 2.000000e-01 : f32
    %8 = vector.broadcast %cst_6 : f32 to vector<8x128xf32>
    %9 = arith.mulf %8, %5 : vector<8x128xf32>
    %10 = arith.select %7, %5, %9 : vector<8x128xi1>, vector<8x128xf32>
    %c0_7 = arith.constant 0 : index
    %c0_8 = arith.constant 0 : index
    %11 = vector.load %arg4[%c0_7, %c0_8] : memref<128x128xf32, #tpu.memory_space<vmem>>, vector<128x128xf32>
    %cst_9 = arith.constant dense<0.000000e+00> : vector<8x128xf32>
    %12 = tpu.matmul %10, %11, %cst_9 {dimension_numbers = #tpu.dot_dimension_numbers<[1], [0], [0], [1], [0, 0, 1, 1], [], []>, precision = #tpu.contract_precision<fp32>} : vector<8x128xf32>, vector<128x128xf32>, vector<8x128xf32> -> vector<8x128xf32>
    %c0_10 = arith.constant 0 : index
    %c0_11 = arith.constant 0 : index
    %13 = vector.load %arg5[%c0_10, %c0_11] : memref<1x128xf32, #tpu.memory_space<vmem>>, vector<1x128xf32>
    %14 = vector.broadcast %13 : vector<1x128xf32> to vector<8x128xf32>
    %15 = arith.addf %12, %14 : vector<8x128xf32>
    %cst_12 = arith.constant 0.000000e+00 : f32
    %16 = vector.broadcast %cst_12 : f32 to vector<8x128xf32>
    %17 = arith.cmpf ogt, %15, %16 : vector<8x128xf32>
    %cst_13 = arith.constant 2.000000e-01 : f32
    %18 = vector.broadcast %cst_13 : f32 to vector<8x128xf32>
    %19 = arith.mulf %18, %15 : vector<8x128xf32>
    %20 = arith.select %17, %15, %19 : vector<8x128xi1>, vector<8x128xf32>
    %c0_14 = arith.constant 0 : index
    %c0_15 = arith.constant 0 : index
    %21 = vector.load %arg6[%c0_14, %c0_15] : memref<128x128xf32, #tpu.memory_space<vmem>>, vector<128x128xf32>
    %cst_16 = arith.constant dense<0.000000e+00> : vector<8x128xf32>
    %22 = tpu.matmul %20, %21, %cst_16 {dimension_numbers = #tpu.dot_dimension_numbers<[1], [0], [0], [1], [0, 0, 1, 1], [], []>, precision = #tpu.contract_precision<fp32>} : vector<8x128xf32>, vector<128x128xf32>, vector<8x128xf32> -> vector<8x128xf32>
    %c0_17 = arith.constant 0 : index
    %c0_18 = arith.constant 0 : index
    %23 = vector.load %arg7[%c0_17, %c0_18] : memref<1x128xf32, #tpu.memory_space<vmem>>, vector<1x128xf32>
    %24 = vector.broadcast %23 : vector<1x128xf32> to vector<8x128xf32>
    %25 = arith.addf %22, %24 : vector<8x128xf32>
    %cst_19 = arith.constant 0.000000e+00 : f32
    %26 = vector.broadcast %cst_19 : f32 to vector<8x128xf32>
    %27 = arith.cmpf ogt, %25, %26 : vector<8x128xf32>
    %cst_20 = arith.constant 2.000000e-01 : f32
    %28 = vector.broadcast %cst_20 : f32 to vector<8x128xf32>
    %29 = arith.mulf %28, %25 : vector<8x128xf32>
    %30 = arith.select %27, %25, %29 : vector<8x128xi1>, vector<8x128xf32>
    %31 = math.absf %30 : vector<8x128xf32>
    %c0_21 = arith.constant 0 : index
    %c0_22 = arith.constant 0 : index
    %32 = vector.load %arg8[%c0_21, %c0_22] : memref<128x128xf32, #tpu.memory_space<vmem>>, vector<128x128xf32>
    %cst_23 = arith.constant dense<0.000000e+00> : vector<8x128xf32>
    %33 = tpu.matmul %31, %32, %cst_23 {dimension_numbers = #tpu.dot_dimension_numbers<[1], [0], [0], [1], [0, 0, 1, 1], [], []>, precision = #tpu.contract_precision<fp32>} : vector<8x128xf32>, vector<128x128xf32>, vector<8x128xf32> -> vector<8x128xf32>
    %c0_24 = arith.constant 0 : index
    %c0_25 = arith.constant 0 : index
    %34 = vector.load %arg9[%c0_24, %c0_25] : memref<1x128xf32, #tpu.memory_space<vmem>>, vector<1x128xf32>
    %35 = vector.broadcast %34 : vector<1x128xf32> to vector<8x128xf32>
    %36 = arith.addf %33, %35 : vector<8x128xf32>
    %c0_26 = arith.constant 0 : index
    %c0_27 = arith.constant 0 : index
    %37 = vector.load %arg10[%c0_26, %c0_27] : memref<8x128xf32, #tpu.memory_space<vmem>>, vector<8x128xf32>
    tpu.vector_store %arg10[%c0_26, %c0_27], %36 {strides = array<i32>} : memref<8x128xf32, #tpu.memory_space<vmem>>, vector<8x128xf32>,
    return
  }
  func.func @transform_0(%arg0: i32) -> (i32, i32) {
    %c0_i32 = arith.constant 0 : i32
    %c0_i32_0 = arith.constant 0 : i32
    return %arg0, %c0_i32 : i32, i32
  }
  func.func @transform_1(%arg0: i32) -> (i32, i32) {
    %c0_i32 = arith.constant 0 : i32
    %c0_i32_0 = arith.constant 0 : i32
    %c0_i32_1 = arith.constant 0 : i32
    return %c0_i32, %c0_i32_0 : i32, i32
  }
  func.func @transform_2(%arg0: i32) -> (i32, i32) {
    %c0_i32 = arith.constant 0 : i32
    %c0_i32_0 = arith.constant 0 : i32
    %c0_i32_1 = arith.constant 0 : i32
    return %c0_i32, %c0_i32_0 : i32, i32
  }
  func.func @transform_3(%arg0: i32) -> (i32, i32) {
    %c0_i32 = arith.constant 0 : i32
    %c0_i32_0 = arith.constant 0 : i32
    %c0_i32_1 = arith.constant 0 : i32
    return %c0_i32, %c0_i32_0 : i32, i32
  }
  func.func @transform_4(%arg0: i32) -> (i32, i32) {
    %c0_i32 = arith.constant 0 : i32
    %c0_i32_0 = arith.constant 0 : i32
    %c0_i32_1 = arith.constant 0 : i32
    return %c0_i32, %c0_i32_0 : i32, i32
  }
  func.func @transform_5(%arg0: i32) -> (i32, i32) {
    %c0_i32 = arith.constant 0 : i32
    %c0_i32_0 = arith.constant 0 : i32
    %c0_i32_1 = arith.constant 0 : i32
    return %c0_i32, %c0_i32_0 : i32, i32
  }
  func.func @transform_6(%arg0: i32) -> (i32, i32) {
    %c0_i32 = arith.constant 0 : i32
    %c0_i32_0 = arith.constant 0 : i32
    %c0_i32_1 = arith.constant 0 : i32
    return %c0_i32, %c0_i32_0 : i32, i32
  }
  func.func @transform_7(%arg0: i32) -> (i32, i32) {
    %c0_i32 = arith.constant 0 : i32
    %c0_i32_0 = arith.constant 0 : i32
    %c0_i32_1 = arith.constant 0 : i32
    return %c0_i32, %c0_i32_0 : i32, i32
  }
  func.func @transform_8(%arg0: i32) -> (i32, i32) {
    %c0_i32 = arith.constant 0 : i32
    %c0_i32_0 = arith.constant 0 : i32
    %c0_i32_1 = arith.constant 0 : i32
    return %c0_i32, %c0_i32_0 : i32, i32
  }
  func.func @transform_9(%arg0: i32) -> (i32, i32) {
    %c0_i32 = arith.constant 0 : i32
    %c0_i32_0 = arith.constant 0 : i32
    return %arg0, %c0_i32 : i32, i32
  }
}

</mosaic_0001>

<llo_original>
// kernel: tpu_custom_call.1
$region0: #{tpu_custom_call.1}
  #allocation0 [shape = 'u32[]', space=smem, size = 0x4, offset = 0x4, fixed_abs, tag = 'smem constant byte address 0x4 - core index']
  #allocation1 [shape = 'u32[72,128]{1,0:T(1,128)}', space=vmem, size = 0x9000, scoped, tag = 'internal scratch']
  %s0 = inlined_call_operand.hbm [shape: f32[8,8], index: 0, kind: input, shape index: {}]
  %s1 = inlined_call_operand.hbm [shape: f32[8,128], index: 1, kind: input, shape index: {}]
  %s2 = inlined_call_operand.vmem [shape: f32[1,128], index: 2, kind: input, shape index: {}]
  %s3 = inlined_call_operand.hbm [shape: f32[128,128], index: 3, kind: input, shape index: {}]
  %s4 = inlined_call_operand.vmem [shape: f32[1,128], index: 4, kind: input, shape index: {}]
  %s5 = inlined_call_operand.hbm [shape: f32[128,128], index: 5, kind: input, shape index: {}]
  %s6 = inlined_call_operand.vmem [shape: f32[1,128], index: 6, kind: input, shape index: {}]
  %s7 = inlined_call_operand.hbm [shape: f32[128,128], index: 7, kind: input, shape index: {}]
  %s8 = inlined_call_operand.vmem [shape: f32[1,128], index: 8, kind: input, shape index: {}]
  %s9 = inlined_call_operand.hbm [shape: f32[8,128], index: 9, kind: output, shape index: {}]
  %s10 = sld [smem:[#allocation0]]
  $region66: #{tpu_custom_call.1} parent=0
    _
  %s12 = ssub.s32 1, %s10
  %s13 = scalar_select 0, %s12, %s10
  $region1: #{tpu_custom_call.1} parent=0
    #allocation2 [shape = 'u8[4096]{0}', space=vmem, size = 0x1000, scoped, tag = 'input window, operand 0, single buffered']
    #allocation3 [shape = 's32[1]{0}', space=sflag, size = 0x4, scoped, tag = 'scoped memory for tpu_custom_call.1']
    #allocation4 [shape = 's32[1]{0}', space=sflag, size = 0x4, scoped, tag = 'scoped memory for tpu_custom_call.1']
    #allocation5 [shape = 'u8[4096]{0}', space=vmem, size = 0x1000, scoped, tag = 'input window, operand 1, single buffered']
    #allocation6 [shape = 's32[1]{0}', space=sflag, size = 0x4, scoped, tag = 'scoped memory for tpu_custom_call.1']
    #allocation7 [shape = 'u8[65536]{0}', space=vmem, size = 0x10000, scoped, tag = 'input window, operand 3, single buffered']
    #allocation8 [shape = 'u8[65536]{0}', space=vmem, size = 0x10000, scoped, tag = 'input window, operand 5, single buffered']
    #allocation9 [shape = 's32[1]{0}', space=sflag, size = 0x4, scoped, tag = 'scoped memory for tpu_custom_call.1']
    #allocation10 [shape = 'u8[65536]{0}', space=vmem, size = 0x10000, scoped, tag = 'input window, operand 7, single buffered']
    #allocation11 [shape = 'u8[4096]{0}', space=vmem, size = 0x1000, scoped, tag = 'output window, operand 0, single buffered']
    %14 = vsyncpa [#allocation3], 0
    %15 = vsyncpa [#allocation6], 0
    %16 = vsyncpa [#allocation9], 0
    %17 = vsyncpa [#allocation4], 0
    // Predicated region
    $region2: #{tpu_custom_call.1} parent=1 // pred_check
      _
    $region3: #{tpu_custom_call.1} parent=1 // pred_check_branch
      %19 = sbr.rel (0) target = $region5
    $region4: #{tpu_custom_call.1} parent=1 // pred_region
      %21 = vsyncadd [#allocation3], 0
      %s23 = sshll.u32 %s0, 4
      %s24 = int_to_ptr.hbm [resolvable:$true] %s23
      %s25 = sshll.u32 [#allocation2], 4
      %s26 = int_to_ptr.vmem [resolvable:$true] %s25
      %28 = dma.hbm_to_vmem [thread:$0]  %s24, 128, %s26, [#allocation3]
    $region5: #{tpu_custom_call.1} parent=1 // pred_fallthru
      _
    // Predicated region
    $region6: #{tpu_custom_call.1} parent=1 // pred_check
      _
    $region7: #{tpu_custom_call.1} parent=1 // pred_check_branch
      %30 = sbr.rel (0) target = $region9
    $region8: #{tpu_custom_call.1} parent=1 // pred_region
      %32 = vsyncadd [#allocation6], 0
      %s34 = sshll.u32 %s1, 4
      %s35 = int_to_ptr.hbm [resolvable:$true] %s34
      %s36 = sshll.u32 [#allocation5], 4
      %s37 = int_to_ptr.vmem [resolvable:$true] %s36
      %39 = dma.hbm_to_vmem [thread:$0]  %s35, 128, %s37, [#allocation6]
    $region9: #{tpu_custom_call.1} parent=1 // pred_fallthru
      _
    // Predicated region
    $region10: #{tpu_custom_call.1} parent=1 // pred_check
      _
    $region11: #{tpu_custom_call.1} parent=1 // pred_check_branch
      %41 = sbr.rel (0) target = $region13
    $region12: #{tpu_custom_call.1} parent=1 // pred_region
      _
    $region13: #{tpu_custom_call.1} parent=1 // pred_fallthru
      _
    // Predicated region
    $region14: #{tpu_custom_call.1} parent=1 // pred_check
      _
    $region15: #{tpu_custom_call.1} parent=1 // pred_check_branch
      %43 = sbr.rel (0) target = $region17
    $region16: #{tpu_custom_call.1} parent=1 // pred_region
      %45 = vsyncadd [#allocation6], 0
      %s46 = sshll.u32 %s3, 4
      %s47 = int_to_ptr.hbm [resolvable:$true] %s46
      %s48 = sshll.u32 [#allocation7], 4
      %s49 = int_to_ptr.vmem [resolvable:$true] %s48
      %54 = dma.hbm_to_vmem [thread:$0]  %s47, 2048, %s49, [#allocation6], 128, 128, 8
    $region17: #{tpu_custom_call.1} parent=1 // pred_fallthru
      _
    // Predicated region
    $region18: #{tpu_custom_call.1} parent=1 // pred_check
      _
    $region19: #{tpu_custom_call.1} parent=1 // pred_check_branch
      %56 = sbr.rel (0) target = $region21
    $region20: #{tpu_custom_call.1} parent=1 // pred_region
      _
    $region21: #{tpu_custom_call.1} parent=1 // pred_fallthru
      _
    // Predicated region
    $region22: #{tpu_custom_call.1} parent=1 // pred_check
      _
    $region23: #{tpu_custom_call.1} parent=1 // pred_check_branch
      %58 = sbr.rel (0) target = $region25
    $region24: #{tpu_custom_call.1} parent=1 // pred_region
      %60 = vsyncadd [#allocation9], 0
      %s61 = sshll.u32 %s5, 4
      %s62 = int_to_ptr.hbm [resolvable:$true] %s61
      %s63 = sshll.u32 [#allocation8], 4
      %s64 = int_to_ptr.vmem [resolvable:$true] %s63
      %69 = dma.hbm_to_vmem [thread:$0]  %s62, 2048, %s64, [#allocation9], 128, 128, 8
    $region25: #{tpu_custom_call.1} parent=1 // pred_fallthru
      _
    // Predicated region
    $region26: #{tpu_custom_call.1} parent=1 // pred_check
      _
    $region27: #{tpu_custom_call.1} parent=1 // pred_check_branch
      %71 = sbr.rel (0) target = $region29
    $region28: #{tpu_custom_call.1} parent=1 // pred_region
      _
    $region29: #{tpu_custom_call.1} parent=1 // pred_fallthru
      _
    // Predicated region
    $region30: #{tpu_custom_call.1} parent=1 // pred_check
      _
    $region31: #{tpu_custom_call.1} parent=1 // pred_check_branch
      %73 = sbr.rel (0) target = $region33
    $region32: #{tpu_custom_call.1} parent=1 // pred_region
      %75 = vsyncadd [#allocation9], 0
      %s76 = sshll.u32 %s7, 4
      %s77 = int_to_ptr.hbm [resolvable:$true] %s76
      %s78 = sshll.u32 [#allocation10], 4
      %s79 = int_to_ptr.vmem [resolvable:$true] %s78
      %84 = dma.hbm_to_vmem [thread:$0]  %s77, 2048, %s79, [#allocation9], 128, 128, 8
    $region33: #{tpu_custom_call.1} parent=1 // pred_fallthru
      _
    // Predicated region
    $region34: #{tpu_custom_call.1} parent=1 // pred_check
      _
    $region35: #{tpu_custom_call.1} parent=1 // pred_check_branch
      %86 = sbr.rel (0) target = $region37
    $region36: #{tpu_custom_call.1} parent=1 // pred_region
      _
    $region37: #{tpu_custom_call.1} parent=1 // pred_fallthru
      _
    // Predicated region
    $region38: #{tpu_custom_call.1} parent=1 // pred_check
      _
    $region39: #{tpu_custom_call.1} parent=1 // pred_check_branch
      %88 = sbr.rel (0) target = $region41
    $region40: #{tpu_custom_call.1} parent=1 // pred_region
      %90 = dma.done [#allocation3], 128
    $region41: #{tpu_custom_call.1} parent=1 // pred_fallthru
      _
    // Predicated region
    $region42: #{tpu_custom_call.1} parent=1 // pred_check
      _
    $region43: #{tpu_custom_call.1} parent=1 // pred_check_branch
      %92 = sbr.rel (0) target = $region45
    $region44: #{tpu_custom_call.1} parent=1 // pred_region
      %94 = dma.done [#allocation6], 128
    $region45: #{tpu_custom_call.1} parent=1 // pred_fallthru
      _
    // Predicated region
    $region46: #{tpu_custom_call.1} parent=1 // pred_check
      _
    $region47: #{tpu_custom_call.1} parent=1 // pred_check_branch
      %96 = sbr.rel (0) target = $region49
    $region48: #{tpu_custom_call.1} parent=1 // pred_region
      %98 = dma.done [#allocation6], 2048
    $region49: #{tpu_custom_call.1} parent=1 // pred_fallthru
      _
    // Predicated region
    $region50: #{tpu_custom_call.1} parent=1 // pred_check
      _
    $region51: #{tpu_custom_call.1} parent=1 // pred_check_branch
      %100 = sbr.rel (0) target = $region53
    $region52: #{tpu_custom_call.1} parent=1 // pred_region
      %102 = dma.done [#allocation9], 2048
    $region53: #{tpu_custom_call.1} parent=1 // pred_fallthru
      _
    // Predicated region
    $region54: #{tpu_custom_call.1} parent=1 // pred_check
      _
    $region55: #{tpu_custom_call.1} parent=1 // pred_check_branch
      %104 = sbr.rel (0) target = $region57
    $region56: #{tpu_custom_call.1} parent=1 // pred_region
      %106 = dma.done [#allocation9], 2048
    $region57: #{tpu_custom_call.1} parent=1 // pred_fallthru
      _
    %v107 = vld [vmem:[#allocation2] sm:$0xff]
    %v108 = vld [vmem:[#allocation5] sm:$0xff]
    %v109 = vld [vmem:[%s2] sm:$0x1]
    %v111 = vperm.slane %v109, 0
    %vm113 = vcmask 64512
    %v115 = vsel %vm113, %v107, 0
    %117 = vmatpush.msra.mxu0 0.0
    %118 = vmatpush.msra.mxu0 0.0
    %119 = vmatpush.msra.mxu0 0.0
    %120 = vmatpush.msra.mxu0 0.0
    %121 = vmatpush.msra.mxu0 0.0
    %122 = vmatpush.msra.mxu0 0.0
    %123 = vmatpush.msra.mxu0 0.0
    %124 = vmatpush.msra.mxu0 0.0
    %125 = vmatpush.msra.mxu0 0.0
    %126 = vmatpush.msra.mxu0 0.0
    %127 = vmatpush.msra.mxu0 0.0
    %128 = vmatpush.msra.mxu0 0.0
    %129 = vmatpush.msra.mxu0 0.0
    %130 = vmatpush.msra.mxu0 0.0
    %131 = vmatpush.msra.mxu0 0.0
    %v132 = vand.u32 %v108, 4294901760
    %133 = vmatpush.msra.mxu0 %v132
    %v134 = vand.u32 %v115, 4294901760
    %v135 = vsub.f32 %v115, %v134
    %v136 = vand.u32 %v135, 4294901760
    %v137 = vsub.f32 %v135, %v136
    %v138 = vand.u32 %v137, 4294901760
    %139 = vmatmul.f32.gmra.mxu0 %v138
    %v140 = vpop.f32.mrf.mxu0
    %v141 = vadd.f32 %v111, %v140
    %142 = vdwg.mxu0
    %143 = vmatpush.msra.mxu0 0.0
    %144 = vmatpush.msra.mxu0 0.0
    %145 = vmatpush.msra.mxu0 0.0
    %146 = vmatpush.msra.mxu0 0.0
    %147 = vmatpush.msra.mxu0 0.0
    %148 = vmatpush.msra.mxu0 0.0
    %149 = vmatpush.msra.mxu0 0.0
    %150 = vmatpush.msra.mxu0 0.0
    %151 = vmatpush.msra.mxu0 0.0
    %152 = vmatpush.msra.mxu0 0.0
    %153 = vmatpush.msra.mxu0 0.0
    %154 = vmatpush.msra.mxu0 0.0
    %155 = vmatpush.msra.mxu0 0.0
    %156 = vmatpush.msra.mxu0 0.0
    %157 = vmatpush.msra.mxu0 0.0
    %v158 = vand.u32 %v108, 4294901760
    %v159 = vsub.f32 %v108, %v158
    %v160 = vand.u32 %v159, 4294901760
    %v161 = vsub.f32 %v159, %v160
    %v162 = vand.u32 %v161, 4294901760
    %163 = vmatpush.msra.mxu0 %v162
    %v164 = vand.u32 %v115, 4294901760
    %165 = vmatmul.f32.gmra.mxu0 %v164
    %v166 = vpop.f32.mrf.mxu0
    %v167 = vadd.f32 %v141, %v166
    %168 = vdwg.mxu0
    %169 = vmatpush.msra.mxu0 0.0
    %170 = vmatpush.msra.mxu0 0.0
    %171 = vmatpush.msra.mxu0 0.0
    %172 = vmatpush.msra.mxu0 0.0
    %173 = vmatpush.msra.mxu0 0.0
    %174 = vmatpush.msra.mxu0 0.0
    %175 = vmatpush.msra.mxu0 0.0
    %176 = vmatpush.msra.mxu0 0.0
    %177 = vmatpush.msra.mxu0 0.0
    %178 = vmatpush.msra.mxu0 0.0
    %179 = vmatpush.msra.mxu0 0.0
    %180 = vmatpush.msra.mxu0 0.0
    %181 = vmatpush.msra.mxu0 0.0
    %182 = vmatpush.msra.mxu0 0.0
    %183 = vmatpush.msra.mxu0 0.0
    %v184 = vand.u32 %v108, 4294901760
    %v185 = vsub.f32 %v108, %v184
    %186 = vmatpush.msra.mxu0 %v185
    %v187 = vand.u32 %v115, 4294901760
    %v188 = vsub.f32 %v115, %v187
    %189 = vmatmul.f32.gmra.mxu0 %v188
    %v190 = vpop.f32.mrf.mxu0
    %v191 = vadd.f32 %v167, %v190
    %192 = vdwg.mxu0
    %193 = vmatpush.msra.mxu0 0.0
    %194 = vmatpush.msra.mxu0 0.0
    %195 = vmatpush.msra.mxu0 0.0
    %196 = vmatpush.msra.mxu0 0.0
    %197 = vmatpush.msra.mxu0 0.0
    %198 = vmatpush.msra.mxu0 0.0
    %199 = vmatpush.msra.mxu0 0.0
    %200 = vmatpush.msra.mxu0 0.0
    %201 = vmatpush.msra.mxu0 0.0
    %202 = vmatpush.msra.mxu0 0.0
    %203 = vmatpush.msra.mxu0 0.0
    %204 = vmatpush.msra.mxu0 0.0
    %205 = vmatpush.msra.mxu0 0.0
    %206 = vmatpush.msra.mxu0 0.0
    %207 = vmatpush.msra.mxu0 0.0
    %v208 = vand.u32 %v108, 4294901760
    %209 = vmatpush.msra.mxu0 %v208
    %v210 = vand.u32 %v115, 4294901760
    %v211 = vsub.f32 %v115, %v210
    %v212 = vand.u32 %v211, 4294901760
    %213 = vmatmul.f32.gmra.mxu0 %v212
    %v214 = vpop.f32.mrf.mxu0
    %v215 = vadd.f32 %v191, %v214
    %216 = vdwg.mxu0
    %217 = vmatpush.msra.mxu0 0.0
    %218 = vmatpush.msra.mxu0 0.0
    %219 = vmatpush.msra.mxu0 0.0
    %220 = vmatpush.msra.mxu0 0.0
    %221 = vmatpush.msra.mxu0 0.0
    %222 = vmatpush.msra.mxu0 0.0
    %223 = vmatpush.msra.mxu0 0.0
    %224 = vmatpush.msra.mxu0 0.0
    %225 = vmatpush.msra.mxu0 0.0
    %226 = vmatpush.msra.mxu0 0.0
    %227 = vmatpush.msra.mxu0 0.0
    %228 = vmatpush.msra.mxu0 0.0
    %229 = vmatpush.msra.mxu0 0.0
    %230 = vmatpush.msra.mxu0 0.0
    %231 = vmatpush.msra.mxu0 0.0
    %v232 = vand.u32 %v108, 4294901760
    %v233 = vsub.f32 %v108, %v232
    %v234 = vand.u32 %v233, 4294901760
    %235 = vmatpush.msra.mxu0 %v234
    %v236 = vand.u32 %v115, 4294901760
    %237 = vmatmul.f32.gmra.mxu0 %v236
    %v238 = vpop.f32.mrf.mxu0
    %v239 = vadd.f32 %v215, %v238
    %240 = vdwg.mxu0
    %241 = vmatpush.msra.mxu0 0.0
    %242 = vmatpush.msra.mxu0 0.0
    %243 = vmatpush.msra.mxu0 0.0
    %244 = vmatpush.msra.mxu0 0.0
    %245 = vmatpush.msra.mxu0 0.0
    %246 = vmatpush.msra.mxu0 0.0
    %247 = vmatpush.msra.mxu0 0.0
    %248 = vmatpush.msra.mxu0 0.0
    %249 = vmatpush.msra.mxu0 0.0
    %250 = vmatpush.msra.mxu0 0.0
    %251 = vmatpush.msra.mxu0 0.0
    %252 = vmatpush.msra.mxu0 0.0
    %253 = vmatpush.msra.mxu0 0.0
    %254 = vmatpush.msra.mxu0 0.0
    %255 = vmatpush.msra.mxu0 0.0
    %v256 = vand.u32 %v108, 4294901760
    %257 = vmatpush.msra.mxu0 %v256
    %v258 = vand.u32 %v115, 4294901760
    %259 = vmatmul.f32.gmra.mxu0 %v258
    %v260 = vpop.f32.mrf.mxu0
    %v261 = vadd.f32 %v239, %v260
    %262 = vdwg.mxu0
    %vm263 = vcmp.gt.f32.partialorder %v261, 0.0
    %v264 = vmul.f32 %v261, 0.2
    %v265 = vsel %vm263, %v261, %v264
    %v266 = vld [vmem:[#allocation7] sm:$0xff]
    %v267 = vld [vmem:[#allocation7 + $0x8] sm:$0xff]
    %v268 = vld [vmem:[#allocation7 + $0x10] sm:$0xff]
    %v269 = vld [vmem:[#allocation7 + $0x18] sm:$0xff]
    %v270 = vld [vmem:[#allocation7 + $0x20] sm:$0xff]
    %v271 = vld [vmem:[#allocation7 + $0x28] sm:$0xff]
    %v272 = vld [vmem:[#allocation7 + $0x30] sm:$0xff]
    %v273 = vld [vmem:[#allocation7 + $0x38] sm:$0xff]
    %v274 = vld [vmem:[#allocation7 + $0x40] sm:$0xff]
    %v275 = vld [vmem:[#allocation7 + $0x48] sm:$0xff]
    %v276 = vld [vmem:[#allocation7 + $0x50] sm:$0xff]
    %v277 = vld [vmem:[#allocation7 + $0x58] sm:$0xff]
    %v278 = vld [vmem:[#allocation7 + $0x60] sm:$0xff]
    %v279 = vld [vmem:[#allocation7 + $0x68] sm:$0xff]
    %v280 = vld [vmem:[#allocation7 + $0x70] sm:$0xff]
    %v281 = vld [vmem:[#allocation7 + $0x78] sm:$0xff]
    %v282 = vld [vmem:[%s4] sm:$0x1]
    %v284 = vperm.slane %v282, 0
    %v286 = vand.u32 %v281, 4294901760
    %287 = vmatpush.msra.mxu0 %v286
    %v288 = vand.u32 %v280, 4294901760
    %289 = vmatpush.msra.mxu0 %v288
    %v290 = vand.u32 %v279, 4294901760
    %291 = vmatpush.msra.mxu0 %v290
    %v292 = vand.u32 %v278, 4294901760
    %293 = vmatpush.msra.mxu0 %v292
    %v294 = vand.u32 %v277, 4294901760
    %295 = vmatpush.msra.mxu0 %v294
    %v296 = vand.u32 %v276, 4294901760
    %297 = vmatpush.msra.mxu0 %v296
    %v298 = vand.u32 %v275, 4294901760
    %299 = vmatpush.msra.mxu0 %v298
    %v300 = vand.u32 %v274, 4294901760
    %301 = vmatpush.msra.mxu0 %v300
    %v302 = vand.u32 %v273, 4294901760
    %303 = vmatpush.msra.mxu0 %v302
    %v304 = vand.u32 %v272, 4294901760
    %305 = vmatpush.msra.mxu0 %v304
    %v306 = vand.u32 %v271, 4294901760
    %307 = vmatpush.msra.mxu0 %v306
    %v308 = vand.u32 %v270, 4294901760
    %309 = vmatpush.msra.mxu0 %v308
    %v310 = vand.u32 %v269, 4294901760
    %311 = vmatpush.msra.mxu0 %v310
    %v312 = vand.u32 %v268, 4294901760
    %313 = vmatpush.msra.mxu0 %v312
    %v314 = vand.u32 %v267, 4294901760
    %315 = vmatpush.msra.mxu0 %v314
    %v316 = vand.u32 %v266, 4294901760
    %317 = vmatpush.msra.mxu0 %v316
    %v318 = vand.u32 %v265, 4294901760
    %v319 = vsub.f32 %v265, %v318
    %v320 = vand.u32 %v319, 4294901760
    %v321 = vsub.f32 %v319, %v320
    %v322 = vand.u32 %v321, 4294901760
    %323 = vmatmul.f32.gmra.mxu0 %v322
    %v324 = vpop.f32.mrf.mxu0
    %v325 = vadd.f32 %v284, %v324
    %326 = vdwg.mxu0
    %v327 = vand.u32 %v281, 4294901760
    %v328 = vsub.f32 %v281, %v327
    %v329 = vand.u32 %v328, 4294901760
    %v330 = vsub.f32 %v328, %v329
    %v331 = vand.u32 %v330, 4294901760
    %332 = vmatpush.msra.mxu0 %v331
    %v333 = vand.u32 %v280, 4294901760
    %v334 = vsub.f32 %v280, %v333
    %v335 = vand.u32 %v334, 4294901760
    %v336 = vsub.f32 %v334, %v335
    %v337 = vand.u32 %v336, 4294901760
    %338 = vmatpush.msra.mxu0 %v337
    %v339 = vand.u32 %v279, 4294901760
    %v340 = vsub.f32 %v279, %v339
    %v341 = vand.u32 %v340, 4294901760
    %v342 = vsub.f32 %v340, %v341
    %v343 = vand.u32 %v342, 4294901760
    %344 = vmatpush.msra.mxu0 %v343
    %v345 = vand.u32 %v278, 4294901760
    %v346 = vsub.f32 %v278, %v345
    %v347 = vand.u32 %v346, 4294901760
    %v348 = vsub.f32 %v346, %v347
    %v349 = vand.u32 %v348, 4294901760
    %350 = vmatpush.msra.mxu0 %v349
    %v351 = vand.u32 %v277, 4294901760
    %v352 = vsub.f32 %v277, %v351
    %v353 = vand.u32 %v352, 4294901760
    %v354 = vsub.f32 %v352, %v353
    %v355 = vand.u32 %v354, 4294901760
    %356 = vmatpush.msra.mxu0 %v355
    %v357 = vand.u32 %v276, 4294901760
    %v358 = vsub.f32 %v276, %v357
    %v359 = vand.u32 %v358, 4294901760
    %v360 = vsub.f32 %v358, %v359
    %v361 = vand.u32 %v360, 4294901760
    %362 = vmatpush.msra.mxu0 %v361
    %v363 = vand.u32 %v275, 4294901760
    %v364 = vsub.f32 %v275, %v363
    %v365 = vand.u32 %v364, 4294901760
    %v366 = vsub.f32 %v364, %v365
    %v367 = vand.u32 %v366, 4294901760
    %368 = vmatpush.msra.mxu0 %v367
    %v369 = vand.u32 %v274, 4294901760
    %v370 = vsub.f32 %v274, %v369
    %v371 = vand.u32 %v370, 4294901760
    %v372 = vsub.f32 %v370, %v371
    %v373 = vand.u32 %v372, 4294901760
    %374 = vmatpush.msra.mxu0 %v373
    %v375 = vand.u32 %v273, 4294901760
    %v376 = vsub.f32 %v273, %v375
    %v377 = vand.u32 %v376, 4294901760
    %v378 = vsub.f32 %v376, %v377
    %v379 = vand.u32 %v378, 4294901760
    %380 = vmatpush.msra.mxu0 %v379
    %v381 = vand.u32 %v272, 4294901760
    %v382 = vsub.f32 %v272, %v381
    %v383 = vand.u32 %v382, 4294901760
    %v384 = vsub.f32 %v382, %v383
    %v385 = vand.u32 %v384, 4294901760
    %386 = vmatpush.msra.mxu0 %v385
    %v387 = vand.u32 %v271, 4294901760
    %v388 = vsub.f32 %v271, %v387
    %v389 = vand.u32 %v388, 4294901760
    %v390 = vsub.f32 %v388, %v389
    %v391 = vand.u32 %v390, 4294901760
    %392 = vmatpush.msra.mxu0 %v391
    %v393 = vand.u32 %v270, 4294901760
    %v394 = vsub.f32 %v270, %v393
    %v395 = vand.u32 %v394, 4294901760
    %v396 = vsub.f32 %v394, %v395
    %v397 = vand.u32 %v396, 4294901760
    %398 = vmatpush.msra.mxu0 %v397
    %v399 = vand.u32 %v269, 4294901760
    %v400 = vsub.f32 %v269, %v399
    %v401 = vand.u32 %v400, 4294901760
    %v402 = vsub.f32 %v400, %v401
    %v403 = vand.u32 %v402, 4294901760
    %404 = vmatpush.msra.mxu0 %v403
    %v405 = vand.u32 %v268, 4294901760
    %v406 = vsub.f32 %v268, %v405
    %v407 = vand.u32 %v406, 4294901760
    %v408 = vsub.f32 %v406, %v407
    %v409 = vand.u32 %v408, 4294901760
    %410 = vmatpush.msra.mxu0 %v409
    %v411 = vand.u32 %v267, 4294901760
    %v412 = vsub.f32 %v267, %v411
    %v413 = vand.u32 %v412, 4294901760
    %v414 = vsub.f32 %v412, %v413
    %v415 = vand.u32 %v414, 4294901760
    %416 = vmatpush.msra.mxu0 %v415
    %v417 = vand.u32 %v266, 4294901760
    %v418 = vsub.f32 %v266, %v417
    %v419 = vand.u32 %v418, 4294901760
    %v420 = vsub.f32 %v418, %v419
    %v421 = vand.u32 %v420, 4294901760
    %422 = vmatpush.msra.mxu0 %v421
    %v423 = vand.u32 %v265, 4294901760
    %424 = vmatmul.f32.gmra.mxu0 %v423
    %v425 = vpop.f32.mrf.mxu0
    %v426 = vadd.f32 %v325, %v425
    %427 = vdwg.mxu0
    %v428 = vand.u32 %v281, 4294901760
    %v429 = vsub.f32 %v281, %v428
    %430 = vmatpush.msra.mxu0 %v429
    %v431 = vand.u32 %v280, 4294901760
    %v432 = vsub.f32 %v280, %v431
    %433 = vmatpush.msra.mxu0 %v432
    %v434 = vand.u32 %v279, 4294901760
    %v435 = vsub.f32 %v279, %v434
    %436 = vmatpush.msra.mxu0 %v435
    %v437 = vand.u32 %v278, 4294901760
    %v438 = vsub.f32 %v278, %v437
    %439 = vmatpush.msra.mxu0 %v438
    %v440 = vand.u32 %v277, 4294901760
    %v441 = vsub.f32 %v277, %v440
    %442 = vmatpush.msra.mxu0 %v441
    %v443 = vand.u32 %v276, 4294901760
    %v444 = vsub.f32 %v276, %v443
    %445 = vmatpush.msra.mxu0 %v444
    %v446 = vand.u32 %v275, 4294901760
    %v447 = vsub.f32 %v275, %v446
    %448 = vmatpush.msra.mxu0 %v447
    %v449 = vand.u32 %v274, 4294901760
    %v450 = vsub.f32 %v274, %v449
    %451 = vmatpush.msra.mxu0 %v450
    %v452 = vand.u32 %v273, 4294901760
    %v453 = vsub.f32 %v273, %v452
    %454 = vmatpush.msra.mxu0 %v453
    %v455 = vand.u32 %v272, 4294901760
    %v456 = vsub.f32 %v272, %v455
    %457 = vmatpush.msra.mxu0 %v456
    %v458 = vand.u32 %v271, 4294901760
    %v459 = vsub.f32 %v271, %v458
    %460 = vmatpush.msra.mxu0 %v459
    %v461 = vand.u32 %v270, 4294901760
    %v462 = vsub.f32 %v270, %v461
    %463 = vmatpush.msra.mxu0 %v462
    %v464 = vand.u32 %v269, 4294901760
    %v465 = vsub.f32 %v269, %v464
    %466 = vmatpush.msra.mxu0 %v465
    %v467 = vand.u32 %v268, 4294901760
    %v468 = vsub.f32 %v268, %v467
    %469 = vmatpush.msra.mxu0 %v468
    %v470 = vand.u32 %v267, 4294901760
    %v471 = vsub.f32 %v267, %v470
    %472 = vmatpush.msra.mxu0 %v471
    %v473 = vand.u32 %v266, 4294901760
    %v474 = vsub.f32 %v266, %v473
    %475 = vmatpush.msra.mxu0 %v474
    %v476 = vand.u32 %v265, 4294901760
    %v477 = vsub.f32 %v265, %v476
    %478 = vmatmul.f32.gmra.mxu0 %v477
    %v479 = vpop.f32.mrf.mxu0
    %v480 = vadd.f32 %v426, %v479
    %481 = vdwg.mxu0
    %v482 = vand.u32 %v281, 4294901760
    %483 = vmatpush.msra.mxu0 %v482
    %v484 = vand.u32 %v280, 4294901760
    %485 = vmatpush.msra.mxu0 %v484
    %v486 = vand.u32 %v279, 4294901760
    %487 = vmatpush.msra.mxu0 %v486
    %v488 = vand.u32 %v278, 4294901760
    %489 = vmatpush.msra.mxu0 %v488
    %v490 = vand.u32 %v277, 4294901760
    %491 = vmatpush.msra.mxu0 %v490
    %v492 = vand.u32 %v276, 4294901760
    %493 = vmatpush.msra.mxu0 %v492
    %v494 = vand.u32 %v275, 4294901760
    %495 = vmatpush.msra.mxu0 %v494
    %v496 = vand.u32 %v274, 4294901760
    %497 = vmatpush.msra.mxu0 %v496
    %v498 = vand.u32 %v273, 4294901760
    %499 = vmatpush.msra.mxu0 %v498
    %v500 = vand.u32 %v272, 4294901760
    %501 = vmatpush.msra.mxu0 %v500
    %v502 = vand.u32 %v271, 4294901760
    %503 = vmatpush.msra.mxu0 %v502
    %v504 = vand.u32 %v270, 4294901760
    %505 = vmatpush.msra.mxu0 %v504
    %v506 = vand.u32 %v269, 4294901760
    %507 = vmatpush.msra.mxu0 %v506
    %v508 = vand.u32 %v268, 4294901760
    %509 = vmatpush.msra.mxu0 %v508
    %v510 = vand.u32 %v267, 4294901760
    %511 = vmatpush.msra.mxu0 %v510
    %v512 = vand.u32 %v266, 4294901760
    %513 = vmatpush.msra.mxu0 %v512
    %v514 = vand.u32 %v265, 4294901760
    %v515 = vsub.f32 %v265, %v514
    %v516 = vand.u32 %v515, 4294901760
    %517 = vmatmul.f32.gmra.mxu0 %v516
    %v518 = vpop.f32.mrf.mxu0
    %v519 = vadd.f32 %v480, %v518
    %520 = vdwg.mxu0
    %v521 = vand.u32 %v281, 4294901760
    %v522 = vsub.f32 %v281, %v521
    %v523 = vand.u32 %v522, 4294901760
    %524 = vmatpush.msra.mxu0 %v523
    %v525 = vand.u32 %v280, 4294901760
    %v526 = vsub.f32 %v280, %v525
    %v527 = vand.u32 %v526, 4294901760
    %528 = vmatpush.msra.mxu0 %v527
    %v529 = vand.u32 %v279, 4294901760
    %v530 = vsub.f32 %v279, %v529
    %v531 = vand.u32 %v530, 4294901760
    %532 = vmatpush.msra.mxu0 %v531
    %v533 = vand.u32 %v278, 4294901760
    %v534 = vsub.f32 %v278, %v533
    %v535 = vand.u32 %v534, 4294901760
    %536 = vmatpush.msra.mxu0 %v535
    %v537 = vand.u32 %v277, 4294901760
    %v538 = vsub.f32 %v277, %v537
    %v539 = vand.u32 %v538, 4294901760
    %540 = vmatpush.msra.mxu0 %v539
    %v541 = vand.u32 %v276, 4294901760
    %v542 = vsub.f32 %v276, %v541
    %v543 = vand.u32 %v542, 4294901760
    %544 = vmatpush.msra.mxu0 %v543
    %v545 = vand.u32 %v275, 4294901760
    %v546 = vsub.f32 %v275, %v545
    %v547 = vand.u32 %v546, 4294901760
    %548 = vmatpush.msra.mxu0 %v547
    %v549 = vand.u32 %v274, 4294901760
    %v550 = vsub.f32 %v274, %v549
    %v551 = vand.u32 %v550, 4294901760
    %552 = vmatpush.msra.mxu0 %v551
    %v553 = vand.u32 %v273, 4294901760
    %v554 = vsub.f32 %v273, %v553
    %v555 = vand.u32 %v554, 4294901760
    %556 = vmatpush.msra.mxu0 %v555
    %v557 = vand.u32 %v272, 4294901760
    %v558 = vsub.f32 %v272, %v557
    %v559 = vand.u32 %v558, 4294901760
    %560 = vmatpush.msra.mxu0 %v559
    %v561 = vand.u32 %v271, 4294901760
    %v562 = vsub.f32 %v271, %v561
    %v563 = vand.u32 %v562, 4294901760
    %564 = vmatpush.msra.mxu0 %v563
    %v565 = vand.u32 %v270, 4294901760
    %v566 = vsub.f32 %v270, %v565
    %v567 = vand.u32 %v566, 4294901760
    %568 = vmatpush.msra.mxu0 %v567
    %v569 = vand.u32 %v269, 4294901760
    %v570 = vsub.f32 %v269, %v569
    %v571 = vand.u32 %v570, 4294901760
    %572 = vmatpush.msra.mxu0 %v571
    %v573 = vand.u32 %v268, 4294901760
    %v574 = vsub.f32 %v268, %v573
    %v575 = vand.u32 %v574, 4294901760
    %576 = vmatpush.msra.mxu0 %v575
    %v577 = vand.u32 %v267, 4294901760
    %v578 = vsub.f32 %v267, %v577
    %v579 = vand.u32 %v578, 4294901760
    %580 = vmatpush.msra.mxu0 %v579
    %v581 = vand.u32 %v266, 4294901760
    %v582 = vsub.f32 %v266, %v581
    %v583 = vand.u32 %v582, 4294901760
    %584 = vmatpush.msra.mxu0 %v583
    %v585 = vand.u32 %v265, 4294901760
    %586 = vmatmul.f32.gmra.mxu0 %v585
    %v587 = vpop.f32.mrf.mxu0
    %v588 = vadd.f32 %v519, %v587
    %589 = vdwg.mxu0
    %v590 = vand.u32 %v281, 4294901760
    %591 = vmatpush.msra.mxu0 %v590
    %v592 = vand.u32 %v280, 4294901760
    %593 = vmatpush.msra.mxu0 %v592
    %v594 = vand.u32 %v279, 4294901760
    %595 = vmatpush.msra.mxu0 %v594
    %v596 = vand.u32 %v278, 4294901760
    %597 = vmatpush.msra.mxu0 %v596
    %v598 = vand.u32 %v277, 4294901760
    %599 = vmatpush.msra.mxu0 %v598
    %v600 = vand.u32 %v276, 4294901760
    %601 = vmatpush.msra.mxu0 %v600
    %v602 = vand.u32 %v275, 4294901760
    %603 = vmatpush.msra.mxu0 %v602
    %v604 = vand.u32 %v274, 4294901760
    %605 = vmatpush.msra.mxu0 %v604
    %v606 = vand.u32 %v273, 4294901760
    %607 = vmatpush.msra.mxu0 %v606
    %v608 = vand.u32 %v272, 4294901760
    %609 = vmatpush.msra.mxu0 %v608
    %v610 = vand.u32 %v271, 4294901760
    %611 = vmatpush.msra.mxu0 %v610
    %v612 = vand.u32 %v270, 4294901760
    %613 = vmatpush.msra.mxu0 %v612
    %v614 = vand.u32 %v269, 4294901760
    %615 = vmatpush.msra.mxu0 %v614
    %v616 = vand.u32 %v268, 4294901760
    %617 = vmatpush.msra.mxu0 %v616
    %v618 = vand.u32 %v267, 4294901760
    %619 = vmatpush.msra.mxu0 %v618
    %v620 = vand.u32 %v266, 4294901760
    %621 = vmatpush.msra.mxu0 %v620
    %v622 = vand.u32 %v265, 4294901760
    %623 = vmatmul.f32.gmra.mxu0 %v622
    %v624 = vpop.f32.mrf.mxu0
    %v625 = vadd.f32 %v588, %v624
    %626 = vdwg.mxu0
    %vm627 = vcmp.gt.f32.partialorder %v625, 0.0
    %v628 = vmul.f32 %v625, 0.2
    %v629 = vsel %vm627, %v625, %v628
    %v630 = vld [vmem:[#allocation8] sm:$0xff]
    %v631 = vld [vmem:[#allocation8 + $0x8] sm:$0xff]
    %v632 = vld [vmem:[#allocation8 + $0x10] sm:$0xff]
    %v633 = vld [vmem:[#allocation8 + $0x18] sm:$0xff]
    %v634 = vld [vmem:[#allocation8 + $0x20] sm:$0xff]
    %v635 = vld [vmem:[#allocation8 + $0x28] sm:$0xff]
    %v636 = vld [vmem:[#allocation8 + $0x30] sm:$0xff]
    %v637 = vld [vmem:[#allocation8 + $0x38] sm:$0xff]
    %v638 = vld [vmem:[#allocation8 + $0x40] sm:$0xff]
    %v639 = vld [vmem:[#allocation8 + $0x48] sm:$0xff]
    %v640 = vld [vmem:[#allocation8 + $0x50] sm:$0xff]
    %v641 = vld [vmem:[#allocation8 + $0x58] sm:$0xff]
    %v642 = vld [vmem:[#allocation8 + $0x60] sm:$0xff]
    %v643 = vld [vmem:[#allocation8 + $0x68] sm:$0xff]
    %v644 = vld [vmem:[#allocation8 + $0x70] sm:$0xff]
    %v645 = vld [vmem:[#allocation8 + $0x78] sm:$0xff]
    %v646 = vld [vmem:[%s6] sm:$0x1]
    %v648 = vperm.slane %v646, 0
    %v650 = vand.u32 %v645, 4294901760
    %651 = vmatpush.msra.mxu0 %v650
    %v652 = vand.u32 %v644, 4294901760
    %653 = vmatpush.msra.mxu0 %v652
    %v654 = vand.u32 %v643, 4294901760
    %655 = vmatpush.msra.mxu0 %v654
    %v656 = vand.u32 %v642, 4294901760
    %657 = vmatpush.msra.mxu0 %v656
    %v658 = vand.u32 %v641, 4294901760
    %659 = vmatpush.msra.mxu0 %v658
    %v660 = vand.u32 %v640, 4294901760
    %661 = vmatpush.msra.mxu0 %v660
    %v662 = vand.u32 %v639, 4294901760
    %663 = vmatpush.msra.mxu0 %v662
    %v664 = vand.u32 %v638, 4294901760
    %665 = vmatpush.msra.mxu0 %v664
    %v666 = vand.u32 %v637, 4294901760
    %667 = vmatpush.msra.mxu0 %v666
    %v668 = vand.u32 %v636, 4294901760
    %669 = vmatpush.msra.mxu0 %v668
    %v670 = vand.u32 %v635, 4294901760
    %671 = vmatpush.msra.mxu0 %v670
    %v672 = vand.u32 %v634, 4294901760
    %673 = vmatpush.msra.mxu0 %v672
    %v674 = vand.u32 %v633, 4294901760
    %675 = vmatpush.msra.mxu0 %v674
    %v676 = vand.u32 %v632, 4294901760
    %677 = vmatpush.msra.mxu0 %v676
    %v678 = vand.u32 %v631, 4294901760
    %679 = vmatpush.msra.mxu0 %v678
    %v680 = vand.u32 %v630, 4294901760
    %681 = vmatpush.msra.mxu0 %v680
    %v682 = vand.u32 %v629, 4294901760
    %v683 = vsub.f32 %v629, %v682
    %v684 = vand.u32 %v683, 4294901760
    %v685 = vsub.f32 %v683, %v684
    %v686 = vand.u32 %v685, 4294901760
    %687 = vmatmul.f32.gmra.mxu0 %v686
    %v688 = vpop.f32.mrf.mxu0
    %v689 = vadd.f32 %v648, %v688
    %690 = vdwg.mxu0
    %v691 = vand.u32 %v645, 4294901760
    %v692 = vsub.f32 %v645, %v691
    %v693 = vand.u32 %v692, 4294901760
    %v694 = vsub.f32 %v692, %v693
    %v695 = vand.u32 %v694, 4294901760
    %696 = vmatpush.msra.mxu0 %v695
    %v697 = vand.u32 %v644, 4294901760
    %v698 = vsub.f32 %v644, %v697
    %v699 = vand.u32 %v698, 4294901760
    %v700 = vsub.f32 %v698, %v699
    %v701 = vand.u32 %v700, 4294901760
    %702 = vmatpush.msra.mxu0 %v701
    %v703 = vand.u32 %v643, 4294901760
    %v704 = vsub.f32 %v643, %v703
    %v705 = vand.u32 %v704, 4294901760
    %v706 = vsub.f32 %v704, %v705
    %v707 = vand.u32 %v706, 4294901760
    %708 = vmatpush.msra.mxu0 %v707
    %v709 = vand.u32 %v642, 4294901760
    %v710 = vsub.f32 %v642, %v709
    %v711 = vand.u32 %v710, 4294901760
    %v712 = vsub.f32 %v710, %v711
    %v713 = vand.u32 %v712, 4294901760
    %714 = vmatpush.msra.mxu0 %v713
    %v715 = vand.u32 %v641, 4294901760
    %v716 = vsub.f32 %v641, %v715
    %v717 = vand.u32 %v716, 4294901760
    %v718 = vsub.f32 %v716, %v717
    %v719 = vand.u32 %v718, 4294901760
    %720 = vmatpush.msra.mxu0 %v719
    %v721 = vand.u32 %v640, 4294901760
    %v722 = vsub.f32 %v640, %v721
    %v723 = vand.u32 %v722, 4294901760
    %v724 = vsub.f32 %v722, %v723
    %v725 = vand.u32 %v724, 4294901760
    %726 = vmatpush.msra.mxu0 %v725
    %v727 = vand.u32 %v639, 4294901760
    %v728 = vsub.f32 %v639, %v727
    %v729 = vand.u32 %v728, 4294901760
    %v730 = vsub.f32 %v728, %v729
    %v731 = vand.u32 %v730, 4294901760
    %732 = vmatpush.msra.mxu0 %v731
    %v733 = vand.u32 %v638, 4294901760
    %v734 = vsub.f32 %v638, %v733
    %v735 = vand.u32 %v734, 4294901760
    %v736 = vsub.f32 %v734, %v735
    %v737 = vand.u32 %v736, 4294901760
    %738 = vmatpush.msra.mxu0 %v737
    %v739 = vand.u32 %v637, 4294901760
    %v740 = vsub.f32 %v637, %v739
    %v741 = vand.u32 %v740, 4294901760
    %v742 = vsub.f32 %v740, %v741
    %v743 = vand.u32 %v742, 4294901760
    %744 = vmatpush.msra.mxu0 %v743
    %v745 = vand.u32 %v636, 4294901760
    %v746 = vsub.f32 %v636, %v745
    %v747 = vand.u32 %v746, 4294901760
    %v748 = vsub.f32 %v746, %v747
    %v749 = vand.u32 %v748, 4294901760
    %750 = vmatpush.msra.mxu0 %v749
    %v751 = vand.u32 %v635, 4294901760
    %v752 = vsub.f32 %v635, %v751
    %v753 = vand.u32 %v752, 4294901760
    %v754 = vsub.f32 %v752, %v753
    %v755 = vand.u32 %v754, 4294901760
    %756 = vmatpush.msra.mxu0 %v755
    %v757 = vand.u32 %v634, 4294901760
    %v758 = vsub.f32 %v634, %v757
    %v759 = vand.u32 %v758, 4294901760
    %v760 = vsub.f32 %v758, %v759
    %v761 = vand.u32 %v760, 4294901760
    %762 = vmatpush.msra.mxu0 %v761
    %v763 = vand.u32 %v633, 4294901760
    %v764 = vsub.f32 %v633, %v763
    %v765 = vand.u32 %v764, 4294901760
    %v766 = vsub.f32 %v764, %v765
    %v767 = vand.u32 %v766, 4294901760
    %768 = vmatpush.msra.mxu0 %v767
    %v769 = vand.u32 %v632, 4294901760
    %v770 = vsub.f32 %v632, %v769
    %v771 = vand.u32 %v770, 4294901760
    %v772 = vsub.f32 %v770, %v771
    %v773 = vand.u32 %v772, 4294901760
    %774 = vmatpush.msra.mxu0 %v773
    %v775 = vand.u32 %v631, 4294901760
    %v776 = vsub.f32 %v631, %v775
    %v777 = vand.u32 %v776, 4294901760
    %v778 = vsub.f32 %v776, %v777
    %v779 = vand.u32 %v778, 4294901760
    %780 = vmatpush.msra.mxu0 %v779
    %v781 = vand.u32 %v630, 4294901760
    %v782 = vsub.f32 %v630, %v781
    %v783 = vand.u32 %v782, 4294901760
    %v784 = vsub.f32 %v782, %v783
    %v785 = vand.u32 %v784, 4294901760
    %786 = vmatpush.msra.mxu0 %v785
    %v787 = vand.u32 %v629, 4294901760
    %788 = vmatmul.f32.gmra.mxu0 %v787
    %v789 = vpop.f32.mrf.mxu0
    %v790 = vadd.f32 %v689, %v789
    %791 = vdwg.mxu0
    %v792 = vand.u32 %v645, 4294901760
    %v793 = vsub.f32 %v645, %v792
    %794 = vmatpush.msra.mxu0 %v793
    %v795 = vand.u32 %v644, 4294901760
    %v796 = vsub.f32 %v644, %v795
    %797 = vmatpush.msra.mxu0 %v796
    %v798 = vand.u32 %v643, 4294901760
    %v799 = vsub.f32 %v643, %v798
    %800 = vmatpush.msra.mxu0 %v799
    %v801 = vand.u32 %v642, 4294901760
    %v802 = vsub.f32 %v642, %v801
    %803 = vmatpush.msra.mxu0 %v802
    %v804 = vand.u32 %v641, 4294901760
    %v805 = vsub.f32 %v641, %v804
    %806 = vmatpush.msra.mxu0 %v805
    %v807 = vand.u32 %v640, 4294901760
    %v808 = vsub.f32 %v640, %v807
    %809 = vmatpush.msra.mxu0 %v808
    %v810 = vand.u32 %v639, 4294901760
    %v811 = vsub.f32 %v639, %v810
    %812 = vmatpush.msra.mxu0 %v811
    %v813 = vand.u32 %v638, 4294901760
    %v814 = vsub.f32 %v638, %v813
    %815 = vmatpush.msra.mxu0 %v814
    %v816 = vand.u32 %v637, 4294901760
    %v817 = vsub.f32 %v637, %v816
    %818 = vmatpush.msra.mxu0 %v817
    %v819 = vand.u32 %v636, 4294901760
    %v820 = vsub.f32 %v636, %v819
    %821 = vmatpush.msra.mxu0 %v820
    %v822 = vand.u32 %v635, 4294901760
    %v823 = vsub.f32 %v635, %v822
    %824 = vmatpush.msra.mxu0 %v823
    %v825 = vand.u32 %v634, 4294901760
    %v826 = vsub.f32 %v634, %v825
    %827 = vmatpush.msra.mxu0 %v826
    %v828 = vand.u32 %v633, 4294901760
    %v829 = vsub.f32 %v633, %v828
    %830 = vmatpush.msra.mxu0 %v829
    %v831 = vand.u32 %v632, 4294901760
    %v832 = vsub.f32 %v632, %v831
    %833 = vmatpush.msra.mxu0 %v832
    %v834 = vand.u32 %v631, 4294901760
    %v835 = vsub.f32 %v631, %v834
    %836 = vmatpush.msra.mxu0 %v835
    %v837 = vand.u32 %v630, 4294901760
    %v838 = vsub.f32 %v630, %v837
    %839 = vmatpush.msra.mxu0 %v838
    %v840 = vand.u32 %v629, 4294901760
    %v841 = vsub.f32 %v629, %v840
    %842 = vmatmul.f32.gmra.mxu0 %v841
    %v843 = vpop.f32.mrf.mxu0
    %v844 = vadd.f32 %v790, %v843
    %845 = vdwg.mxu0
    %v846 = vand.u32 %v645, 4294901760
    %847 = vmatpush.msra.mxu0 %v846
    %v848 = vand.u32 %v644, 4294901760
    %849 = vmatpush.msra.mxu0 %v848
    %v850 = vand.u32 %v643, 4294901760
    %851 = vmatpush.msra.mxu0 %v850
    %v852 = vand.u32 %v642, 4294901760
    %853 = vmatpush.msra.mxu0 %v852
    %v854 = vand.u32 %v641, 4294901760
    %855 = vmatpush.msra.mxu0 %v854
    %v856 = vand.u32 %v640, 4294901760
    %857 = vmatpush.msra.mxu0 %v856
    %v858 = vand.u32 %v639, 4294901760
    %859 = vmatpush.msra.mxu0 %v858
    %v860 = vand.u32 %v638, 4294901760
    %861 = vmatpush.msra.mxu0 %v860
    %v862 = vand.u32 %v637, 4294901760
    %863 = vmatpush.msra.mxu0 %v862
    %v864 = vand.u32 %v636, 4294901760
    %865 = vmatpush.msra.mxu0 %v864
    %v866 = vand.u32 %v635, 4294901760
    %867 = vmatpush.msra.mxu0 %v866
    %v868 = vand.u32 %v634, 4294901760
    %869 = vmatpush.msra.mxu0 %v868
    %v870 = vand.u32 %v633, 4294901760
    %871 = vmatpush.msra.mxu0 %v870
    %v872 = vand.u32 %v632, 4294901760
    %873 = vmatpush.msra.mxu0 %v872
    %v874 = vand.u32 %v631, 4294901760
    %875 = vmatpush.msra.mxu0 %v874
    %v876 = vand.u32 %v630, 4294901760
    %877 = vmatpush.msra.mxu0 %v876
    %v878 = vand.u32 %v629, 4294901760
    %v879 = vsub.f32 %v629, %v878
    %v880 = vand.u32 %v879, 4294901760
    %881 = vmatmul.f32.gmra.mxu0 %v880
    %v882 = vpop.f32.mrf.mxu0
    %v883 = vadd.f32 %v844, %v882
    %884 = vdwg.mxu0
    %v885 = vand.u32 %v645, 4294901760
    %v886 = vsub.f32 %v645, %v885
    %v887 = vand.u32 %v886, 4294901760
    %888 = vmatpush.msra.mxu0 %v887
    %v889 = vand.u32 %v644, 4294901760
    %v890 = vsub.f32 %v644, %v889
    %v891 = vand.u32 %v890, 4294901760
    %892 = vmatpush.msra.mxu0 %v891
    %v893 = vand.u32 %v643, 4294901760
    %v894 = vsub.f32 %v643, %v893
    %v895 = vand.u32 %v894, 4294901760
    %896 = vmatpush.msra.mxu0 %v895
    %v897 = vand.u32 %v642, 4294901760
    %v898 = vsub.f32 %v642, %v897
    %v899 = vand.u32 %v898, 4294901760
    %900 = vmatpush.msra.mxu0 %v899
    %v901 = vand.u32 %v641, 4294901760
    %v902 = vsub.f32 %v641, %v901
    %v903 = vand.u32 %v902, 4294901760
    %904 = vmatpush.msra.mxu0 %v903
    %v905 = vand.u32 %v640, 4294901760
    %v906 = vsub.f32 %v640, %v905
    %v907 = vand.u32 %v906, 4294901760
    %908 = vmatpush.msra.mxu0 %v907
    %v909 = vand.u32 %v639, 4294901760
    %v910 = vsub.f32 %v639, %v909
    %v911 = vand.u32 %v910, 4294901760
    %912 = vmatpush.msra.mxu0 %v911
    %v913 = vand.u32 %v638, 4294901760
    %v914 = vsub.f32 %v638, %v913
    %v915 = vand.u32 %v914, 4294901760
    %916 = vmatpush.msra.mxu0 %v915
    %v917 = vand.u32 %v637, 4294901760
    %v918 = vsub.f32 %v637, %v917
    %v919 = vand.u32 %v918, 4294901760
    %920 = vmatpush.msra.mxu0 %v919
    %v921 = vand.u32 %v636, 4294901760
    %v922 = vsub.f32 %v636, %v921
    %v923 = vand.u32 %v922, 4294901760
    %924 = vmatpush.msra.mxu0 %v923
    %v925 = vand.u32 %v635, 4294901760
    %v926 = vsub.f32 %v635, %v925
    %v927 = vand.u32 %v926, 4294901760
    %928 = vmatpush.msra.mxu0 %v927
    %v929 = vand.u32 %v634, 4294901760
    %v930 = vsub.f32 %v634, %v929
    %v931 = vand.u32 %v930, 4294901760
    %932 = vmatpush.msra.mxu0 %v931
    %v933 = vand.u32 %v633, 4294901760
    %v934 = vsub.f32 %v633, %v933
    %v935 = vand.u32 %v934, 4294901760
    %936 = vmatpush.msra.mxu0 %v935
    %v937 = vand.u32 %v632, 4294901760
    %v938 = vsub.f32 %v632, %v937
    %v939 = vand.u32 %v938, 4294901760
    %940 = vmatpush.msra.mxu0 %v939
    %v941 = vand.u32 %v631, 4294901760
    %v942 = vsub.f32 %v631, %v941
    %v943 = vand.u32 %v942, 4294901760
    %944 = vmatpush.msra.mxu0 %v943
    %v945 = vand.u32 %v630, 4294901760
    %v946 = vsub.f32 %v630, %v945
    %v947 = vand.u32 %v946, 4294901760
    %948 = vmatpush.msra.mxu0 %v947
    %v949 = vand.u32 %v629, 4294901760
    %950 = vmatmul.f32.gmra.mxu0 %v949
    %v951 = vpop.f32.mrf.mxu0
    %v952 = vadd.f32 %v883, %v951
    %953 = vdwg.mxu0
    %v954 = vand.u32 %v645, 4294901760
    %955 = vmatpush.msra.mxu0 %v954
    %v956 = vand.u32 %v644, 4294901760
    %957 = vmatpush.msra.mxu0 %v956
    %v958 = vand.u32 %v643, 4294901760
    %959 = vmatpush.msra.mxu0 %v958
    %v960 = vand.u32 %v642, 4294901760
    %961 = vmatpush.msra.mxu0 %v960
    %v962 = vand.u32 %v641, 4294901760
    %963 = vmatpush.msra.mxu0 %v962
    %v964 = vand.u32 %v640, 4294901760
    %965 = vmatpush.msra.mxu0 %v964
    %v966 = vand.u32 %v639, 4294901760
    %967 = vmatpush.msra.mxu0 %v966
    %v968 = vand.u32 %v638, 4294901760
    %969 = vmatpush.msra.mxu0 %v968
    %v970 = vand.u32 %v637, 4294901760
    %971 = vmatpush.msra.mxu0 %v970
    %v972 = vand.u32 %v636, 4294901760
    %973 = vmatpush.msra.mxu0 %v972
    %v974 = vand.u32 %v635, 4294901760
    %975 = vmatpush.msra.mxu0 %v974
    %v976 = vand.u32 %v634, 4294901760
    %977 = vmatpush.msra.mxu0 %v976
    %v978 = vand.u32 %v633, 4294901760
    %979 = vmatpush.msra.mxu0 %v978
    %v980 = vand.u32 %v632, 4294901760
    %981 = vmatpush.msra.mxu0 %v980
    %v982 = vand.u32 %v631, 4294901760
    %983 = vmatpush.msra.mxu0 %v982
    %v984 = vand.u32 %v630, 4294901760
    %985 = vmatpush.msra.mxu0 %v984
    %v986 = vand.u32 %v629, 4294901760
    %987 = vmatmul.f32.gmra.mxu0 %v986
    %v988 = vpop.f32.mrf.mxu0
    %v989 = vadd.f32 %v952, %v988
    %990 = vdwg.mxu0
    %vm991 = vcmp.gt.f32.partialorder %v989, 0.0
    %v992 = vmul.f32 %v989, 0.2
    %v993 = vsel %vm991, %v989, %v992
    %v994 = vand.u32 2147483647, %v993
    %v995 = vld [vmem:[#allocation10] sm:$0xff]
    %v996 = vld [vmem:[#allocation10 + $0x8] sm:$0xff]
    %v997 = vld [vmem:[#allocation10 + $0x10] sm:$0xff]
    %v998 = vld [vmem:[#allocation10 + $0x18] sm:$0xff]
    %v999 = vld [vmem:[#allocation10 + $0x20] sm:$0xff]
    %v1000 = vld [vmem:[#allocation10 + $0x28] sm:$0xff]
    %v1001 = vld [vmem:[#allocation10 + $0x30] sm:$0xff]
    %v1002 = vld [vmem:[#allocation10 + $0x38] sm:$0xff]
    %v1003 = vld [vmem:[#allocation10 + $0x40] sm:$0xff]
    %v1004 = vld [vmem:[#allocation10 + $0x48] sm:$0xff]
    %v1005 = vld [vmem:[#allocation10 + $0x50] sm:$0xff]
    %v1006 = vld [vmem:[#allocation10 + $0x58] sm:$0xff]
    %v1007 = vld [vmem:[#allocation10 + $0x60] sm:$0xff]
    %v1008 = vld [vmem:[#allocation10 + $0x68] sm:$0xff]
    %v1009 = vld [vmem:[#allocation10 + $0x70] sm:$0xff]
    %v1010 = vld [vmem:[#allocation10 + $0x78] sm:$0xff]
    %v1011 = vld [vmem:[%s8] sm:$0x1]
    %v1013 = vperm.slane %v1011, 0
    %v1015 = vand.u32 %v1010, 4294901760
    %1016 = vmatpush.msra.mxu0 %v1015
    %v1017 = vand.u32 %v1009, 4294901760
    %1018 = vmatpush.msra.mxu0 %v1017
    %v1019 = vand.u32 %v1008, 4294901760
    %1020 = vmatpush.msra.mxu0 %v1019
    %v1021 = vand.u32 %v1007, 4294901760
    %1022 = vmatpush.msra.mxu0 %v1021
    %v1023 = vand.u32 %v1006, 4294901760
    %1024 = vmatpush.msra.mxu0 %v1023
    %v1025 = vand.u32 %v1005, 4294901760
    %1026 = vmatpush.msra.mxu0 %v1025
    %v1027 = vand.u32 %v1004, 4294901760
    %1028 = vmatpush.msra.mxu0 %v1027
    %v1029 = vand.u32 %v1003, 4294901760
    %1030 = vmatpush.msra.mxu0 %v1029
    %v1031 = vand.u32 %v1002, 4294901760
    %1032 = vmatpush.msra.mxu0 %v1031
    %v1033 = vand.u32 %v1001, 4294901760
    %1034 = vmatpush.msra.mxu0 %v1033
    %v1035 = vand.u32 %v1000, 4294901760
    %1036 = vmatpush.msra.mxu0 %v1035
    %v1037 = vand.u32 %v999, 4294901760
    %1038 = vmatpush.msra.mxu0 %v1037
    %v1039 = vand.u32 %v998, 4294901760
    %1040 = vmatpush.msra.mxu0 %v1039
    %v1041 = vand.u32 %v997, 4294901760
    %1042 = vmatpush.msra.mxu0 %v1041
    %v1043 = vand.u32 %v996, 4294901760
    %1044 = vmatpush.msra.mxu0 %v1043
    %v1045 = vand.u32 %v995, 4294901760
    %1046 = vmatpush.msra.mxu0 %v1045
    %v1047 = vand.u32 %v994, 4294901760
    %v1048 = vsub.f32 %v994, %v1047
    %v1049 = vand.u32 %v1048, 4294901760
    %v1050 = vsub.f32 %v1048, %v1049
    %v1051 = vand.u32 %v1050, 4294901760
    %1052 = vmatmul.f32.gmra.mxu0 %v1051
    %v1053 = vpop.f32.mrf.mxu0
    %v1054 = vadd.f32 %v1013, %v1053
    %1055 = vdwg.mxu0
    %v1056 = vand.u32 %v1010, 4294901760
    %v1057 = vsub.f32 %v1010, %v1056
    %v1058 = vand.u32 %v1057, 4294901760
    %v1059 = vsub.f32 %v1057, %v1058
    %v1060 = vand.u32 %v1059, 4294901760
    %1061 = vmatpush.msra.mxu0 %v1060
    %v1062 = vand.u32 %v1009, 4294901760
    %v1063 = vsub.f32 %v1009, %v1062
    %v1064 = vand.u32 %v1063, 4294901760
    %v1065 = vsub.f32 %v1063, %v1064
    %v1066 = vand.u32 %v1065, 4294901760
    %1067 = vmatpush.msra.mxu0 %v1066
    %v1068 = vand.u32 %v1008, 4294901760
    %v1069 = vsub.f32 %v1008, %v1068
    %v1070 = vand.u32 %v1069, 4294901760
    %v1071 = vsub.f32 %v1069, %v1070
    %v1072 = vand.u32 %v1071, 4294901760
    %1073 = vmatpush.msra.mxu0 %v1072
    %v1074 = vand.u32 %v1007, 4294901760
    %v1075 = vsub.f32 %v1007, %v1074
    %v1076 = vand.u32 %v1075, 4294901760
    %v1077 = vsub.f32 %v1075, %v1076
    %v1078 = vand.u32 %v1077, 4294901760
    %1079 = vmatpush.msra.mxu0 %v1078
    %v1080 = vand.u32 %v1006, 4294901760
    %v1081 = vsub.f32 %v1006, %v1080
    %v1082 = vand.u32 %v1081, 4294901760
    %v1083 = vsub.f32 %v1081, %v1082
    %v1084 = vand.u32 %v1083, 4294901760
    %1085 = vmatpush.msra.mxu0 %v1084
    %v1086 = vand.u32 %v1005, 4294901760
    %v1087 = vsub.f32 %v1005, %v1086
    %v1088 = vand.u32 %v1087, 4294901760
    %v1089 = vsub.f32 %v1087, %v1088
    %v1090 = vand.u32 %v1089, 4294901760
    %1091 = vmatpush.msra.mxu0 %v1090
    %v1092 = vand.u32 %v1004, 4294901760
    %v1093 = vsub.f32 %v1004, %v1092
    %v1094 = vand.u32 %v1093, 4294901760
    %v1095 = vsub.f32 %v1093, %v1094
    %v1096 = vand.u32 %v1095, 4294901760
    %1097 = vmatpush.msra.mxu0 %v1096
    %v1098 = vand.u32 %v1003, 4294901760
    %v1099 = vsub.f32 %v1003, %v1098
    %v1100 = vand.u32 %v1099, 4294901760
    %v1101 = vsub.f32 %v1099, %v1100
    %v1102 = vand.u32 %v1101, 4294901760
    %1103 = vmatpush.msra.mxu0 %v1102
    %v1104 = vand.u32 %v1002, 4294901760
    %v1105 = vsub.f32 %v1002, %v1104
    %v1106 = vand.u32 %v1105, 4294901760
    %v1107 = vsub.f32 %v1105, %v1106
    %v1108 = vand.u32 %v1107, 4294901760
    %1109 = vmatpush.msra.mxu0 %v1108
    %v1110 = vand.u32 %v1001, 4294901760
    %v1111 = vsub.f32 %v1001, %v1110
    %v1112 = vand.u32 %v1111, 4294901760
    %v1113 = vsub.f32 %v1111, %v1112
    %v1114 = vand.u32 %v1113, 4294901760
    %1115 = vmatpush.msra.mxu0 %v1114
    %v1116 = vand.u32 %v1000, 4294901760
    %v1117 = vsub.f32 %v1000, %v1116
    %v1118 = vand.u32 %v1117, 4294901760
    %v1119 = vsub.f32 %v1117, %v1118
    %v1120 = vand.u32 %v1119, 4294901760
    %1121 = vmatpush.msra.mxu0 %v1120
    %v1122 = vand.u32 %v999, 4294901760
    %v1123 = vsub.f32 %v999, %v1122
    %v1124 = vand.u32 %v1123, 4294901760
    %v1125 = vsub.f32 %v1123, %v1124
    %v1126 = vand.u32 %v1125, 4294901760
    %1127 = vmatpush.msra.mxu0 %v1126
    %v1128 = vand.u32 %v998, 4294901760
    %v1129 = vsub.f32 %v998, %v1128
    %v1130 = vand.u32 %v1129, 4294901760
    %v1131 = vsub.f32 %v1129, %v1130
    %v1132 = vand.u32 %v1131, 4294901760
    %1133 = vmatpush.msra.mxu0 %v1132
    %v1134 = vand.u32 %v997, 4294901760
    %v1135 = vsub.f32 %v997, %v1134
    %v1136 = vand.u32 %v1135, 4294901760
    %v1137 = vsub.f32 %v1135, %v1136
    %v1138 = vand.u32 %v1137, 4294901760
    %1139 = vmatpush.msra.mxu0 %v1138
    %v1140 = vand.u32 %v996, 4294901760
    %v1141 = vsub.f32 %v996, %v1140
    %v1142 = vand.u32 %v1141, 4294901760
    %v1143 = vsub.f32 %v1141, %v1142
    %v1144 = vand.u32 %v1143, 4294901760
    %1145 = vmatpush.msra.mxu0 %v1144
    %v1146 = vand.u32 %v995, 4294901760
    %v1147 = vsub.f32 %v995, %v1146
    %v1148 = vand.u32 %v1147, 4294901760
    %v1149 = vsub.f32 %v1147, %v1148
    %v1150 = vand.u32 %v1149, 4294901760
    %1151 = vmatpush.msra.mxu0 %v1150
    %v1152 = vand.u32 %v994, 4294901760
    %1153 = vmatmul.f32.gmra.mxu0 %v1152
    %v1154 = vpop.f32.mrf.mxu0
    %v1155 = vadd.f32 %v1054, %v1154
    %1156 = vdwg.mxu0
    %v1157 = vand.u32 %v1010, 4294901760
    %v1158 = vsub.f32 %v1010, %v1157
    %1159 = vmatpush.msra.mxu0 %v1158
    %v1160 = vand.u32 %v1009, 4294901760
    %v1161 = vsub.f32 %v1009, %v1160
    %1162 = vmatpush.msra.mxu0 %v1161
    %v1163 = vand.u32 %v1008, 4294901760
    %v1164 = vsub.f32 %v1008, %v1163
    %1165 = vmatpush.msra.mxu0 %v1164
    %v1166 = vand.u32 %v1007, 4294901760
    %v1167 = vsub.f32 %v1007, %v1166
    %1168 = vmatpush.msra.mxu0 %v1167
    %v1169 = vand.u32 %v1006, 4294901760
    %v1170 = vsub.f32 %v1006, %v1169
    %1171 = vmatpush.msra.mxu0 %v1170
    %v1172 = vand.u32 %v1005, 4294901760
    %v1173 = vsub.f32 %v1005, %v1172
    %1174 = vmatpush.msra.mxu0 %v1173
    %v1175 = vand.u32 %v1004, 4294901760
    %v1176 = vsub.f32 %v1004, %v1175
    %1177 = vmatpush.msra.mxu0 %v1176
    %v1178 = vand.u32 %v1003, 4294901760
    %v1179 = vsub.f32 %v1003, %v1178
    %1180 = vmatpush.msra.mxu0 %v1179
    %v1181 = vand.u32 %v1002, 4294901760
    %v1182 = vsub.f32 %v1002, %v1181
    %1183 = vmatpush.msra.mxu0 %v1182
    %v1184 = vand.u32 %v1001, 4294901760
    %v1185 = vsub.f32 %v1001, %v1184
    %1186 = vmatpush.msra.mxu0 %v1185
    %v1187 = vand.u32 %v1000, 4294901760
    %v1188 = vsub.f32 %v1000, %v1187
    %1189 = vmatpush.msra.mxu0 %v1188
    %v1190 = vand.u32 %v999, 4294901760
    %v1191 = vsub.f32 %v999, %v1190
    %1192 = vmatpush.msra.mxu0 %v1191
    %v1193 = vand.u32 %v998, 4294901760
    %v1194 = vsub.f32 %v998, %v1193
    %1195 = vmatpush.msra.mxu0 %v1194
    %v1196 = vand.u32 %v997, 4294901760
    %v1197 = vsub.f32 %v997, %v1196
    %1198 = vmatpush.msra.mxu0 %v1197
    %v1199 = vand.u32 %v996, 4294901760
    %v1200 = vsub.f32 %v996, %v1199
    %1201 = vmatpush.msra.mxu0 %v1200
    %v1202 = vand.u32 %v995, 4294901760
    %v1203 = vsub.f32 %v995, %v1202
    %1204 = vmatpush.msra.mxu0 %v1203
    %v1205 = vand.u32 %v994, 4294901760
    %v1206 = vsub.f32 %v994, %v1205
    %1207 = vmatmul.f32.gmra.mxu0 %v1206
    %v1208 = vpop.f32.mrf.mxu0
    %v1209 = vadd.f32 %v1155, %v1208
    %1210 = vdwg.mxu0
    %v1211 = vand.u32 %v1010, 4294901760
    %1212 = vmatpush.msra.mxu0 %v1211
    %v1213 = vand.u32 %v1009, 4294901760
    %1214 = vmatpush.msra.mxu0 %v1213
    %v1215 = vand.u32 %v1008, 4294901760
    %1216 = vmatpush.msra.mxu0 %v1215
    %v1217 = vand.u32 %v1007, 4294901760
    %1218 = vmatpush.msra.mxu0 %v1217
    %v1219 = vand.u32 %v1006, 4294901760
    %1220 = vmatpush.msra.mxu0 %v1219
    %v1221 = vand.u32 %v1005, 4294901760
    %1222 = vmatpush.msra.mxu0 %v1221
    %v1223 = vand.u32 %v1004, 4294901760
    %1224 = vmatpush.msra.mxu0 %v1223
    %v1225 = vand.u32 %v1003, 4294901760
    %1226 = vmatpush.msra.mxu0 %v1225
    %v1227 = vand.u32 %v1002, 4294901760
    %1228 = vmatpush.msra.mxu0 %v1227
    %v1229 = vand.u32 %v1001, 4294901760
    %1230 = vmatpush.msra.mxu0 %v1229
    %v1231 = vand.u32 %v1000, 4294901760
    %1232 = vmatpush.msra.mxu0 %v1231
    %v1233 = vand.u32 %v999, 4294901760
    %1234 = vmatpush.msra.mxu0 %v1233
    %v1235 = vand.u32 %v998, 4294901760
    %1236 = vmatpush.msra.mxu0 %v1235
    %v1237 = vand.u32 %v997, 4294901760
    %1238 = vmatpush.msra.mxu0 %v1237
    %v1239 = vand.u32 %v996, 4294901760
    %1240 = vmatpush.msra.mxu0 %v1239
    %v1241 = vand.u32 %v995, 4294901760
    %1242 = vmatpush.msra.mxu0 %v1241
    %v1243 = vand.u32 %v994, 4294901760
    %v1244 = vsub.f32 %v994, %v1243
    %v1245 = vand.u32 %v1244, 4294901760
    %1246 = vmatmul.f32.gmra.mxu0 %v1245
    %v1247 = vpop.f32.mrf.mxu0
    %v1248 = vadd.f32 %v1209, %v1247
    %1249 = vdwg.mxu0
    %v1250 = vand.u32 %v1010, 4294901760
    %v1251 = vsub.f32 %v1010, %v1250
    %v1252 = vand.u32 %v1251, 4294901760
    %1253 = vmatpush.msra.mxu0 %v1252
    %v1254 = vand.u32 %v1009, 4294901760
    %v1255 = vsub.f32 %v1009, %v1254
    %v1256 = vand.u32 %v1255, 4294901760
    %1257 = vmatpush.msra.mxu0 %v1256
    %v1258 = vand.u32 %v1008, 4294901760
    %v1259 = vsub.f32 %v1008, %v1258
    %v1260 = vand.u32 %v1259, 4294901760
    %1261 = vmatpush.msra.mxu0 %v1260
    %v1262 = vand.u32 %v1007, 4294901760
    %v1263 = vsub.f32 %v1007, %v1262
    %v1264 = vand.u32 %v1263, 4294901760
    %1265 = vmatpush.msra.mxu0 %v1264
    %v1266 = vand.u32 %v1006, 4294901760
    %v1267 = vsub.f32 %v1006, %v1266
    %v1268 = vand.u32 %v1267, 4294901760
    %1269 = vmatpush.msra.mxu0 %v1268
    %v1270 = vand.u32 %v1005, 4294901760
    %v1271 = vsub.f32 %v1005, %v1270
    %v1272 = vand.u32 %v1271, 4294901760
    %1273 = vmatpush.msra.mxu0 %v1272
    %v1274 = vand.u32 %v1004, 4294901760
    %v1275 = vsub.f32 %v1004, %v1274
    %v1276 = vand.u32 %v1275, 4294901760
    %1277 = vmatpush.msra.mxu0 %v1276
    %v1278 = vand.u32 %v1003, 4294901760
    %v1279 = vsub.f32 %v1003, %v1278
    %v1280 = vand.u32 %v1279, 4294901760
    %1281 = vmatpush.msra.mxu0 %v1280
    %v1282 = vand.u32 %v1002, 4294901760
    %v1283 = vsub.f32 %v1002, %v1282
    %v1284 = vand.u32 %v1283, 4294901760
    %1285 = vmatpush.msra.mxu0 %v1284
    %v1286 = vand.u32 %v1001, 4294901760
    %v1287 = vsub.f32 %v1001, %v1286
    %v1288 = vand.u32 %v1287, 4294901760
    %1289 = vmatpush.msra.mxu0 %v1288
    %v1290 = vand.u32 %v1000, 4294901760
    %v1291 = vsub.f32 %v1000, %v1290
    %v1292 = vand.u32 %v1291, 4294901760
    %1293 = vmatpush.msra.mxu0 %v1292
    %v1294 = vand.u32 %v999, 4294901760
    %v1295 = vsub.f32 %v999, %v1294
    %v1296 = vand.u32 %v1295, 4294901760
    %1297 = vmatpush.msra.mxu0 %v1296
    %v1298 = vand.u32 %v998, 4294901760
    %v1299 = vsub.f32 %v998, %v1298
    %v1300 = vand.u32 %v1299, 4294901760
    %1301 = vmatpush.msra.mxu0 %v1300
    %v1302 = vand.u32 %v997, 4294901760
    %v1303 = vsub.f32 %v997, %v1302
    %v1304 = vand.u32 %v1303, 4294901760
    %1305 = vmatpush.msra.mxu0 %v1304
    %v1306 = vand.u32 %v996, 4294901760
    %v1307 = vsub.f32 %v996, %v1306
    %v1308 = vand.u32 %v1307, 4294901760
    %1309 = vmatpush.msra.mxu0 %v1308
    %v1310 = vand.u32 %v995, 4294901760
    %v1311 = vsub.f32 %v995, %v1310
    %v1312 = vand.u32 %v1311, 4294901760
    %1313 = vmatpush.msra.mxu0 %v1312
    %v1314 = vand.u32 %v994, 4294901760
    %1315 = vmatmul.f32.gmra.mxu0 %v1314
    %v1316 = vpop.f32.mrf.mxu0
    %v1317 = vadd.f32 %v1248, %v1316
    %1318 = vdwg.mxu0
    %v1319 = vand.u32 %v1010, 4294901760
    %1320 = vmatpush.msra.mxu0 %v1319
    %v1321 = vand.u32 %v1009, 4294901760
    %1322 = vmatpush.msra.mxu0 %v1321
    %v1323 = vand.u32 %v1008, 4294901760
    %1324 = vmatpush.msra.mxu0 %v1323
    %v1325 = vand.u32 %v1007, 4294901760
    %1326 = vmatpush.msra.mxu0 %v1325
    %v1327 = vand.u32 %v1006, 4294901760
    %1328 = vmatpush.msra.mxu0 %v1327
    %v1329 = vand.u32 %v1005, 4294901760
    %1330 = vmatpush.msra.mxu0 %v1329
    %v1331 = vand.u32 %v1004, 4294901760
    %1332 = vmatpush.msra.mxu0 %v1331
    %v1333 = vand.u32 %v1003, 4294901760
    %1334 = vmatpush.msra.mxu0 %v1333
    %v1335 = vand.u32 %v1002, 4294901760
    %1336 = vmatpush.msra.mxu0 %v1335
    %v1337 = vand.u32 %v1001, 4294901760
    %1338 = vmatpush.msra.mxu0 %v1337
    %v1339 = vand.u32 %v1000, 4294901760
    %1340 = vmatpush.msra.mxu0 %v1339
    %v1341 = vand.u32 %v999, 4294901760
    %1342 = vmatpush.msra.mxu0 %v1341
    %v1343 = vand.u32 %v998, 4294901760
    %1344 = vmatpush.msra.mxu0 %v1343
    %v1345 = vand.u32 %v997, 4294901760
    %1346 = vmatpush.msra.mxu0 %v1345
    %v1347 = vand.u32 %v996, 4294901760
    %1348 = vmatpush.msra.mxu0 %v1347
    %v1349 = vand.u32 %v995, 4294901760
    %1350 = vmatpush.msra.mxu0 %v1349
    %v1351 = vand.u32 %v994, 4294901760
    %1352 = vmatmul.f32.gmra.mxu0 %v1351
    %v1353 = vpop.f32.mrf.mxu0
    %v1354 = vadd.f32 %v1317, %v1353
    %1355 = vdwg.mxu0
    %1356 = vst [vmem:[#allocation11] sm:$0xff] %v1354
    // Predicated region
    $region58: #{tpu_custom_call.1} parent=1 // pred_check
      _
    $region59: #{tpu_custom_call.1} parent=1 // pred_check_branch
      %1358 = sbr.rel (0) target = $region61
    $region60: #{tpu_custom_call.1} parent=1 // pred_region
      %1360 = vsyncadd [#allocation4], 0
      %s1362 = sshll.u32 [#allocation11], 4
      %s1363 = int_to_ptr.vmem [resolvable:$true] %s1362
      %s1364 = sshll.u32 %s9, 4
      %s1365 = int_to_ptr.hbm [resolvable:$true] %s1364
      %1367 = dma.vmem_to_hbm [thread:$0]  %s1363, 128, %s1365, [#allocation4]
    $region61: #{tpu_custom_call.1} parent=1 // pred_fallthru
      _
    // Predicated region
    $region62: #{tpu_custom_call.1} parent=1 // pred_check
      _
    $region63: #{tpu_custom_call.1} parent=1 // pred_check_branch
      %1369 = sbr.rel (0) target = $region65
    $region64: #{tpu_custom_call.1} parent=1 // pred_region
      %1371 = dma.done [#allocation4], 128
    $region65: #{tpu_custom_call.1} parent=1 // pred_fallthru
      _
    %1372 = vsyncpa [#allocation3], 1
    %1373 = vsyncpa [#allocation6], 1
    %1374 = vsyncpa [#allocation9], 1
    %1375 = vsyncpa [#allocation4], 1

</llo_original>
